<compile_context>
chip_gen: v7x
topology: tpu7x:2x2x1
jax: 0.10.0
libtpu: 0.0.40
codegen_flags: <defaults>
</compile_context>

<pallas_src>
import jax
import jax.numpy as jnp
from jax import lax
from jax.experimental import pallas as pl
from jax.experimental.pallas import tpu as pltpu

_BN_EPS = 1e-5


def _phase_off(d):
    """3x3 tap offset d in {0,1,2} of a stride-2/pad-1 conv -> (input phase, padded offset)."""
    return (0 if d == 1 else 1), (0 if d == 0 else 1)


# ----------------------------------------------------------------------------
# Pallas kernel: one block of Nb images per grid step.
# ----------------------------------------------------------------------------
def _resblockdown_kernel(xp_ref,            # [4, Nb, Ho+1, Wo+1, Cin]  zero-padded stride-2 phases
                         w1_ref,            # [9*Cin, 2*Cout]  bf16: conv1*s1 | shortcut*ss (centre tap)
                         w2_ref,            # [9*Cout, Cout]   bf16: conv2*s2
                         sh_ref,            # [2, Cout] f32: row0 = t1 (pre-ReLU), row1 = t2 + t_shortcut
                         out_ref,           # [Cout, Nb*Ho*Wo] f32 (lane-dense pixel axis)
                         h1pad_ref):        # VMEM scratch [Nb, Ho+2, Wo+2, Cout] f32
    _, Nb, Hp1, Wp1, Cin = xp_ref.shape
    Ho, Wo = Hp1 - 1, Wp1 - 1
    Cout = w2_ref.shape[-1]
    M = Nb * Ho * Wo

    # ---- conv1 (3x3 / stride 2 / pad 1) + fused 1x1/s2 shortcut: ONE im2col matmul.
    # Output (i, j) tap (dy, dx) reads x[2i+dy-1, 2j+dx-1]; in phase coordinates that is
    # phase (dy!=1, dx!=1) at padded offset (dy>0, dx>0) -- all contiguous slices of the
    # BlockSpec-DMA'd padded phases (no staging copies).
    pieces1 = []
    for dy in range(3):
        py, ay = _phase_off(dy)
        for dx in range(3):
            px, ax = _phase_off(dx)
            pieces1.append(xp_ref[2 * py + px, :, ay:ay + Ho, ax:ax + Wo, :])
    patches1 = jnp.concatenate(pieces1, axis=-1).reshape(M, 9 * Cin).astype(jnp.bfloat16)
    mm1 = jnp.dot(patches1, w1_ref[...], preferred_element_type=jnp.float32)   # (M, 2*Cout)
    h1 = jnp.maximum(mm1[:, :Cout] + sh_ref[0, :], 0.0)    # BN1 scale folded into w1 columns
    sc = mm1[:, Cout:]                                      # shortcut; its BN shift is in sh_ref[1]

    # ---- stage h1 into the zero-padded scratch for conv2's im2col:
    #   interior + left/right zero columns as ONE contiguous slab (in-register concat),
    #   plus two contiguous zero-row stores.  Every cell is rewritten every step, so the
    #   kernel stays correct when the "parallel" batch axis is sharded across TensorCores.
    zc = jnp.zeros((Nb, Ho, 1, Cout), jnp.float32)
    h1pad_ref[:, 1:Ho + 1, :, :] = jnp.concatenate(
        [zc, h1.reshape(Nb, Ho, Wo, Cout), zc], axis=2)
    zr = jnp.zeros((Nb, 1, Wo + 2, Cout), jnp.float32)
    h1pad_ref[:, 0:1, :, :] = zr
    h1pad_ref[:, Ho + 1:Ho + 2, :, :] = zr

    # ---- conv2 (3x3 / stride 1 / pad 1): ONE im2col matmul, K = 9*Cout (BN2 scale folded).
    pieces2 = [h1pad_ref[:, dy:dy + Ho, dx:dx + Wo, :]
               for dy in range(3) for dx in range(3)]
    patches2 = jnp.concatenate(pieces2, axis=-1).reshape(M, 9 * Cout).astype(jnp.bfloat16)
    h2 = jnp.dot(patches2, w2_ref[...], preferred_element_type=jnp.float32)    # (M, Cout)

    # ---- residual add + combined BN shifts + final ReLU, then transpose so the store
    # (and the HBM writeback) is 128-lane dense: (Cout, M) with the pixel axis on lanes.
    y = jnp.maximum(h2 + sc + sh_ref[1, :], 0.0)            # (M, Cout)
    out_ref[...] = y.T.astype(out_ref.dtype)                # (Cout, M), dense vst


# ----------------------------------------------------------------------------
# BN folding + deterministic parameter setup (plain-JAX glue).
# ----------------------------------------------------------------------------
def _fold_bn(bias, gamma, beta, mean, var, eps=_BN_EPS):
    """(conv + bias) followed by eval-mode BN == conv * scale + shift (1-D per-channel)."""
    scale = gamma / jnp.sqrt(var + eps)
    shift = (bias - mean) * scale + beta
    return scale.astype(jnp.float32), shift.astype(jnp.float32)


def init_params(key, cin, cout):
    ks = jax.random.split(key, 18)
    n = lambda k, shape, s=0.1: s * jax.random.normal(k, shape, jnp.float32)
    u = lambda k, shape: 1.0 + 0.1 * jax.random.uniform(k, shape, jnp.float32)
    return {
        "conv1_w": n(ks[0], (3, 3, cin, cout)),    # HWIO
        "conv1_b": n(ks[1], (cout,)),
        "bn1_g": 1.0 + n(ks[2], (cout,)), "bn1_b": n(ks[3], (cout,)),
        "bn1_m": n(ks[4], (cout,)),       "bn1_v": u(ks[5], (cout,)),
        "conv2_w": n(ks[6], (3, 3, cout, cout)),
        "conv2_b": n(ks[7], (cout,)),
        "bn2_g": 1.0 + n(ks[8], (cout,)), "bn2_b": n(ks[9], (cout,)),
        "bn2_m": n(ks[10], (cout,)),      "bn2_v": u(ks[11], (cout,)),
        "scut_w": n(ks[12], (1, 1, cin, cout)),    # projection shortcut (always present)
        "scut_b": n(ks[13], (cout,)),
        "scut_g": 1.0 + n(ks[14], (cout,)), "scut_bb": n(ks[15], (cout,)),
        "scut_m": n(ks[16], (cout,)),       "scut_v": u(ks[17], (cout,)),
    }


def _largest_divisor_leq(n, cap):
    best = 1
    for d in range(1, n + 1):
        if n % d == 0 and d <= cap:
            best = d
    return best


# ----------------------------------------------------------------------------
# Wrapper: NCHW in/out, wrapper-padded stride-2 phases, weight/BN folding, Pallas call.
# ----------------------------------------------------------------------------
@jax.jit
def resblockdown_forward(x_nchw, params):
    N, cin, H, W = x_nchw.shape
    if H % 2 or W % 2:
        raise NotImplementedError("even H, W assumed")  # TODO(synk): odd sizes need a high-side halo
    Ho, Wo = H // 2, W // 2
    cout = params["conv1_w"].shape[-1]

    # Batch Nb images per grid step so M = Nb*Ho*Wo approaches the 256-row MXU fill.
    target_nb = max(1, (256 + Ho * Wo - 1) // (Ho * Wo))
    Nb = _largest_divisor_leq(N, target_nb)

    # NCHW -> NHWC, stride-2 phase split, zero-pad top/left by 1 (the only halo a 3x3/s2/p1
    # conv needs).  XLA fuses transpose + slice + pad; the kernel does no staging copies.
    x = jnp.transpose(x_nchw, (0, 2, 3, 1)).astype(jnp.float32)

    def phase(py, px):
        return jnp.pad(x[:, py::2, px::2, :], ((0, 0), (1, 0), (1, 0), (0, 0)))

    xp = jnp.stack([phase(0, 0), phase(0, 1), phase(1, 0), phase(1, 1)], axis=0)
    # xp: (4, N, Ho+1, Wo+1, Cin), phase index = 2*py + px

    # Fold conv bias + eval-mode BN: scales go into the (bf16) weight columns, shifts remain.
    s1, t1 = _fold_bn(params["conv1_b"], params["bn1_g"], params["bn1_b"],
                      params["bn1_m"], params["bn1_v"])
    s2, t2 = _fold_bn(params["conv2_b"], params["bn2_g"], params["bn2_b"],
                      params["bn2_m"], params["bn2_v"])
    ss, ts = _fold_bn(params["scut_b"], params["scut_g"], params["scut_bb"],
                      params["scut_m"], params["scut_v"])

    w1s = params["conv1_w"].reshape(9 * cin, cout) * s1          # (dy,dx,cin) rows = im2col order
    wss = params["scut_w"].reshape(cin, cout) * ss
    w2s = params["conv2_w"].reshape(9 * cout, cout) * s2
    # Fuse the shortcut into conv1's RHS: extra Cout columns, non-zero only at the centre
    # tap (dy=1, dx=1) rows -- exactly the phase-(0,0) pixel the 1x1/s2 conv reads.
    sc_cols = jnp.zeros((9 * cin, cout), jnp.float32).at[4 * cin:5 * cin, :].set(wss)
    w1f = jnp.concatenate([w1s, sc_cols], axis=1).astype(jnp.bfloat16)   # (9*Cin, 2*Cout)
    w2f = w2s.astype(jnp.bfloat16)                                       # (9*Cout, Cout)
    shifts = jnp.stack([t1, t2 + ts], axis=0)                            # (2, Cout) f32

    full = lambda shape: pl.BlockSpec(shape, lambda n: (0,) * len(shape))

    out_flat = pl.pallas_call(
        _resblockdown_kernel,
        out_shape=jax.ShapeDtypeStruct((cout, N * Ho * Wo), jnp.float32),
        grid=(N // Nb,),
        in_specs=[
            pl.BlockSpec((4, Nb, Ho + 1, Wo + 1, cin), lambda n: (0, n, 0, 0, 0)),
            full((9 * cin, 2 * cout)),
            full((9 * cout, cout)),
            full((2, cout)),
        ],
        out_specs=pl.BlockSpec((cout, Nb * Ho * Wo), lambda n: (0, n)),
        scratch_shapes=[pltpu.VMEM((Nb, Ho + 2, Wo + 2, cout), jnp.float32)],
        compiler_params=pltpu.CompilerParams(
            dimension_semantics=("parallel",)),   # v7x: shard batch blocks over the 2 TCs
    )(xp, w1f, w2f, shifts)

    # (Cout, N*Ho*Wo) -> NCHW: the reshape is free (same HBM bytes); one transpose remains.
    return jnp.transpose(out_flat.reshape(cout, N, Ho, Wo), (1, 0, 2, 3))


# ----------------------------------------------------------------------------
# Pure-JAX reference (correctness check).
# ----------------------------------------------------------------------------
def _bn_ref(x, gamma, beta, mean, var, eps=_BN_EPS):
    return (x - mean) / jnp.sqrt(var + eps) * gamma + beta


def resblockdown_reference(x_nchw, p):
    x = jnp.transpose(x_nchw, (0, 2, 3, 1)).astype(jnp.float32)
    dn = ("NHWC", "HWIO", "NHWC")
    conv = lambda a, w, s, pad: lax.conv_general_dilated(
        a, w, (s, s), pad, dimension_numbers=dn, precision=lax.Precision.HIGHEST)
    h = conv(x, p["conv1_w"], 2, ((1, 1), (1, 1))) + p["conv1_b"]
    h = jnp.maximum(_bn_ref(h, p["bn1_g"], p["bn1_b"], p["bn1_m"], p["bn1_v"]), 0.0)
    h = conv(h, p["conv2_w"], 1, ((1, 1), (1, 1))) + p["conv2_b"]
    h = _bn_ref(h, p["bn2_g"], p["bn2_b"], p["bn2_m"], p["bn2_v"])
    sc = conv(x, p["scut_w"], 2, ((0, 0), (0, 0))) + p["scut_b"]
    sc = _bn_ref(sc, p["scut_g"], p["scut_bb"], p["scut_m"], p["scut_v"])
    return jnp.transpose(jnp.maximum(h + sc, 0.0), (0, 3, 1, 2))


if __name__ == "__main__":
    key = jax.random.PRNGKey(0)
    kx, kp = jax.random.split(key)

    # ResBlockDown(in_channels=4, out_channels=8) on x: [2, 4, 16, 16] -> [2, 8, 8, 8]
    N, Cin, Cout, H, W = 2, 4, 8, 16, 16
    x = jax.random.normal(kx, (N, Cin, H, W), jnp.float32)
    params = init_params(kp, Cin, Cout)

    out = jax.block_until_ready(resblockdown_forward(x, params))
    assert out.shape == (N, Cout, H // 2, W // 2), out.shape

    ref = resblockdown_reference(x, params)
    max_err = float(jnp.max(jnp.abs(out - ref)))
    # bf16 MXU staging of the conv operands (per perf review) widens the error vs. the
    # f32 HIGHEST-precision reference; 2e-2 leaves ~10 sigma of headroom at these shapes.
    assert max_err < 2e-2, f"max abs error {max_err}"

    print("KERNEL_OK")
</pallas_src>

<mosaic_0001>
module attributes {stable_mosaic.version = 11 : i64} {
  func.func @_resblockdown_kernel(%arg0: i32, %arg1: memref<4x2x9x9x4xf32, #tpu.memory_space<vmem>>, %arg2: memref<36x16xbf16, #tpu.memory_space<vmem>>, %arg3: memref<72x8xbf16, #tpu.memory_space<vmem>>, %arg4: memref<2x8xf32, #tpu.memory_space<vmem>>, %arg5: memref<8x128xf32, #tpu.memory_space<vmem>>, %arg6: memref<2x10x10x8xf32, #tpu.memory_space<vmem>>) attributes {dimension_semantics = [#tpu.dimension_semantics<parallel>], iteration_bounds = array<i64: 1>, scalar_prefetch = 0 : i64, scratch_operands = 1 : i64, tpu.core_type = #tpu.core_type<tc>, window_params = [{transform_indices = @transform_0, window_bounds = array<i64: 4, 2, 9, 9, 4>}, {pipeline_mode = #tpu.pipeline_mode<synchronous>, transform_indices = @transform_1, window_bounds = array<i64: 36, 16>}, {pipeline_mode = #tpu.pipeline_mode<synchronous>, transform_indices = @transform_2, window_bounds = array<i64: 72, 8>}, {pipeline_mode = #tpu.pipeline_mode<synchronous>, transform_indices = @transform_3, window_bounds = array<i64: 2, 8>}, {transform_indices = @transform_4, window_bounds = array<i64: 8, 128>}]} {
    %c3 = arith.constant 3 : index
    %c0 = arith.constant 0 : index
    %c0_0 = arith.constant 0 : index
    %c0_1 = arith.constant 0 : index
    %c0_2 = arith.constant 0 : index
    %0 = vector.load %arg1[%c3, %c0, %c0_0, %c0_1, %c0_2] : memref<4x2x9x9x4xf32, #tpu.memory_space<vmem>>, vector<1x2x8x8x4xf32>
    %1 = vector.shape_cast %0 : vector<1x2x8x8x4xf32> to vector<2x8x8x4xf32>
    %c2 = arith.constant 2 : index
    %c0_3 = arith.constant 0 : index
    %c0_4 = arith.constant 0 : index
    %c1 = arith.constant 1 : index
    %c0_5 = arith.constant 0 : index
    %2 = vector.load %arg1[%c2, %c0_3, %c0_4, %c1, %c0_5] : memref<4x2x9x9x4xf32, #tpu.memory_space<vmem>>, vector<1x2x8x8x4xf32>
    %3 = vector.shape_cast %2 : vector<1x2x8x8x4xf32> to vector<2x8x8x4xf32>
    %c3_6 = arith.constant 3 : index
    %c0_7 = arith.constant 0 : index
    %c0_8 = arith.constant 0 : index
    %c1_9 = arith.constant 1 : index
    %c0_10 = arith.constant 0 : index
    %4 = vector.load %arg1[%c3_6, %c0_7, %c0_8, %c1_9, %c0_10] : memref<4x2x9x9x4xf32, #tpu.memory_space<vmem>>, vector<1x2x8x8x4xf32>
    %5 = vector.shape_cast %4 : vector<1x2x8x8x4xf32> to vector<2x8x8x4xf32>
    %c1_11 = arith.constant 1 : index
    %c0_12 = arith.constant 0 : index
    %c1_13 = arith.constant 1 : index
    %c0_14 = arith.constant 0 : index
    %c0_15 = arith.constant 0 : index
    %6 = vector.load %arg1[%c1_11, %c0_12, %c1_13, %c0_14, %c0_15] : memref<4x2x9x9x4xf32, #tpu.memory_space<vmem>>, vector<1x2x8x8x4xf32>
    %7 = vector.shape_cast %6 : vector<1x2x8x8x4xf32> to vector<2x8x8x4xf32>
    %c0_16 = arith.constant 0 : index
    %c0_17 = arith.constant 0 : index
    %c1_18 = arith.constant 1 : index
    %c1_19 = arith.constant 1 : index
    %c0_20 = arith.constant 0 : index
    %8 = vector.load %arg1[%c0_16, %c0_17, %c1_18, %c1_19, %c0_20] : memref<4x2x9x9x4xf32, #tpu.memory_space<vmem>>, vector<1x2x8x8x4xf32>
    %9 = vector.shape_cast %8 : vector<1x2x8x8x4xf32> to vector<2x8x8x4xf32>
    %c1_21 = arith.constant 1 : index
    %c0_22 = arith.constant 0 : index
    %c1_23 = arith.constant 1 : index
    %c1_24 = arith.constant 1 : index
    %c0_25 = arith.constant 0 : index
    %10 = vector.load %arg1[%c1_21, %c0_22, %c1_23, %c1_24, %c0_25] : memref<4x2x9x9x4xf32, #tpu.memory_space<vmem>>, vector<1x2x8x8x4xf32>
    %11 = vector.shape_cast %10 : vector<1x2x8x8x4xf32> to vector<2x8x8x4xf32>
    %c3_26 = arith.constant 3 : index
    %c0_27 = arith.constant 0 : index
    %c1_28 = arith.constant 1 : index
    %c0_29 = arith.constant 0 : index
    %c0_30 = arith.constant 0 : index
    %12 = vector.load %arg1[%c3_26, %c0_27, %c1_28, %c0_29, %c0_30] : memref<4x2x9x9x4xf32, #tpu.memory_space<vmem>>, vector<1x2x8x8x4xf32>
    %13 = vector.shape_cast %12 : vector<1x2x8x8x4xf32> to vector<2x8x8x4xf32>
    %c2_31 = arith.constant 2 : index
    %c0_32 = arith.constant 0 : index
    %c1_33 = arith.constant 1 : index
    %c1_34 = arith.constant 1 : index
    %c0_35 = arith.constant 0 : index
    %14 = vector.load %arg1[%c2_31, %c0_32, %c1_33, %c1_34, %c0_35] : memref<4x2x9x9x4xf32, #tpu.memory_space<vmem>>, vector<1x2x8x8x4xf32>
    %15 = vector.shape_cast %14 : vector<1x2x8x8x4xf32> to vector<2x8x8x4xf32>
    %c3_36 = arith.constant 3 : index
    %c0_37 = arith.constant 0 : index
    %c1_38 = arith.constant 1 : index
    %c1_39 = arith.constant 1 : index
    %c0_40 = arith.constant 0 : index
    %16 = vector.load %arg1[%c3_36, %c0_37, %c1_38, %c1_39, %c0_40] : memref<4x2x9x9x4xf32, #tpu.memory_space<vmem>>, vector<1x2x8x8x4xf32>
    %17 = vector.shape_cast %16 : vector<1x2x8x8x4xf32> to vector<2x8x8x4xf32>
    %18 = tpu.concatenate %1, %3, %5, %7, %9, %11, %13, %15, %17 in 3 : vector<2x8x8x4xf32>, vector<2x8x8x4xf32>, vector<2x8x8x4xf32>, vector<2x8x8x4xf32>, vector<2x8x8x4xf32>, vector<2x8x8x4xf32>, vector<2x8x8x4xf32>, vector<2x8x8x4xf32>, vector<2x8x8x4xf32> -> vector<2x8x8x36xf32>
    %19 = vector.shape_cast %18 : vector<2x8x8x36xf32> to vector<128x36xf32>
    %20 = arith.truncf %19 : vector<128x36xf32> to vector<128x36xbf16>
    %c0_41 = arith.constant 0 : index
    %c0_42 = arith.constant 0 : index
    %21 = vector.load %arg2[%c0_41, %c0_42] : memref<36x16xbf16, #tpu.memory_space<vmem>>, vector<36x16xbf16>
    %cst = arith.constant dense<0.000000e+00> : vector<128x16xf32>
    %22 = tpu.matmul %20, %21, %cst {dimension_numbers = #tpu.dot_dimension_numbers<[1], [0], [0], [1], [0, 0, 1, 1], [], []>} : vector<128x36xbf16>, vector<36x16xbf16>, vector<128x16xf32> -> vector<128x16xf32>
    %23 = vector.extract_strided_slice %22 {offsets = [0, 0], sizes = [128, 8], strides = [1, 1]} : vector<128x16xf32> to vector<128x8xf32>
    %c0_43 = arith.constant 0 : index
    %c0_44 = arith.constant 0 : index
    %24 = vector.load %arg4[%c0_43, %c0_44] : memref<2x8xf32, #tpu.memory_space<vmem>>, vector<1x8xf32>
    %25 = vector.shape_cast %24 : vector<1x8xf32> to vector<8xf32>
    %26 = vector.shape_cast %25 : vector<8xf32> to vector<1x8xf32>
    %27 = vector.broadcast %26 : vector<1x8xf32> to vector<128x8xf32>
    %28 = arith.addf %23, %27 : vector<128x8xf32>
    %cst_45 = arith.constant 0.000000e+00 : f32
    %29 = vector.broadcast %cst_45 : f32 to vector<128x8xf32>
    %30 = arith.maximumf %28, %29 : vector<128x8xf32>
    %31 = vector.extract_strided_slice %22 {offsets = [0, 8], sizes = [128, 8], strides = [1, 1]} : vector<128x16xf32> to vector<128x8xf32>
    %cst_46 = arith.constant 0.000000e+00 : f32
    %32 = vector.broadcast %cst_46 : f32 to vector<2x8x1x8xf32>
    %33 = vector.shape_cast %30 : vector<128x8xf32> to vector<2x8x8x8xf32>
    %34 = tpu.concatenate %32, %33, %32 in 2 : vector<2x8x1x8xf32>, vector<2x8x8x8xf32>, vector<2x8x1x8xf32> -> vector<2x8x10x8xf32>
    %c0_47 = arith.constant 0 : index
    %c1_48 = arith.constant 1 : index
    %c0_49 = arith.constant 0 : index
    %c0_50 = arith.constant 0 : index
    %35 = vector.load %arg6[%c0_47, %c1_48, %c0_49, %c0_50] : memref<2x10x10x8xf32, #tpu.memory_space<vmem>>, vector<2x8x10x8xf32>
    tpu.vector_store %arg6[%c0_47, %c1_48, %c0_49, %c0_50], %34 {strides = array<i32>} : memref<2x10x10x8xf32, #tpu.memory_space<vmem>>, vector<2x8x10x8xf32>,
    %cst_51 = arith.constant 0.000000e+00 : f32
    %36 = vector.broadcast %cst_51 : f32 to vector<2x1x10x8xf32>
    %c0_52 = arith.constant 0 : index
    %c0_53 = arith.constant 0 : index
    %c0_54 = arith.constant 0 : index
    %c0_55 = arith.constant 0 : index
    %37 = vector.load %arg6[%c0_52, %c0_53, %c0_54, %c0_55] : memref<2x10x10x8xf32, #tpu.memory_space<vmem>>, vector<2x1x10x8xf32>
    tpu.vector_store %arg6[%c0_52, %c0_53, %c0_54, %c0_55], %36 {strides = array<i32>} : memref<2x10x10x8xf32, #tpu.memory_space<vmem>>, vector<2x1x10x8xf32>,
    %c0_56 = arith.constant 0 : index
    %c9 = arith.constant 9 : index
    %c0_57 = arith.constant 0 : index
    %c0_58 = arith.constant 0 : index
    %38 = vector.load %arg6[%c0_56, %c9, %c0_57, %c0_58] : memref<2x10x10x8xf32, #tpu.memory_space<vmem>>, vector<2x1x10x8xf32>
    tpu.vector_store %arg6[%c0_56, %c9, %c0_57, %c0_58], %36 {strides = array<i32>} : memref<2x10x10x8xf32, #tpu.memory_space<vmem>>, vector<2x1x10x8xf32>,
    %c0_59 = arith.constant 0 : index
    %c0_60 = arith.constant 0 : index
    %c0_61 = arith.constant 0 : index
    %c0_62 = arith.constant 0 : index
    %39 = vector.load %arg6[%c0_59, %c0_60, %c0_61, %c0_62] : memref<2x10x10x8xf32, #tpu.memory_space<vmem>>, vector<2x8x8x8xf32>
    %c0_63 = arith.constant 0 : index
    %c0_64 = arith.constant 0 : index
    %c1_65 = arith.constant 1 : index
    %c0_66 = arith.constant 0 : index
    %40 = vector.load %arg6[%c0_63, %c0_64, %c1_65, %c0_66] : memref<2x10x10x8xf32, #tpu.memory_space<vmem>>, vector<2x8x8x8xf32>
    %c0_67 = arith.constant 0 : index
    %c0_68 = arith.constant 0 : index
    %c2_69 = arith.constant 2 : index
    %c0_70 = arith.constant 0 : index
    %41 = vector.load %arg6[%c0_67, %c0_68, %c2_69, %c0_70] : memref<2x10x10x8xf32, #tpu.memory_space<vmem>>, vector<2x8x8x8xf32>
    %c0_71 = arith.constant 0 : index
    %c1_72 = arith.constant 1 : index
    %c0_73 = arith.constant 0 : index
    %c0_74 = arith.constant 0 : index
    %42 = vector.load %arg6[%c0_71, %c1_72, %c0_73, %c0_74] : memref<2x10x10x8xf32, #tpu.memory_space<vmem>>, vector<2x8x8x8xf32>
    %c0_75 = arith.constant 0 : index
    %c1_76 = arith.constant 1 : index
    %c1_77 = arith.constant 1 : index
    %c0_78 = arith.constant 0 : index
    %43 = vector.load %arg6[%c0_75, %c1_76, %c1_77, %c0_78] : memref<2x10x10x8xf32, #tpu.memory_space<vmem>>, vector<2x8x8x8xf32>
    %c0_79 = arith.constant 0 : index
    %c1_80 = arith.constant 1 : index
    %c2_81 = arith.constant 2 : index
    %c0_82 = arith.constant 0 : index
    %44 = vector.load %arg6[%c0_79, %c1_80, %c2_81, %c0_82] : memref<2x10x10x8xf32, #tpu.memory_space<vmem>>, vector<2x8x8x8xf32>
    %c0_83 = arith.constant 0 : index
    %c2_84 = arith.constant 2 : index
    %c0_85 = arith.constant 0 : index
    %c0_86 = arith.constant 0 : index
    %45 = vector.load %arg6[%c0_83, %c2_84, %c0_85, %c0_86] : memref<2x10x10x8xf32, #tpu.memory_space<vmem>>, vector<2x8x8x8xf32>
    %c0_87 = arith.constant 0 : index
    %c2_88 = arith.constant 2 : index
    %c1_89 = arith.constant 1 : index
    %c0_90 = arith.constant 0 : index
    %46 = vector.load %arg6[%c0_87, %c2_88, %c1_89, %c0_90] : memref<2x10x10x8xf32, #tpu.memory_space<vmem>>, vector<2x8x8x8xf32>
    %c0_91 = arith.constant 0 : index
    %c2_92 = arith.constant 2 : index
    %c2_93 = arith.constant 2 : index
    %c0_94 = arith.constant 0 : index
    %47 = vector.load %arg6[%c0_91, %c2_92, %c2_93, %c0_94] : memref<2x10x10x8xf32, #tpu.memory_space<vmem>>, vector<2x8x8x8xf32>
    %48 = tpu.concatenate %39, %40, %41, %42, %43, %44, %45, %46, %47 in 3 : vector<2x8x8x8xf32>, vector<2x8x8x8xf32>, vector<2x8x8x8xf32>, vector<2x8x8x8xf32>, vector<2x8x8x8xf32>, vector<2x8x8x8xf32>, vector<2x8x8x8xf32>, vector<2x8x8x8xf32>, vector<2x8x8x8xf32> -> vector<2x8x8x72xf32>
    %49 = vector.shape_cast %48 : vector<2x8x8x72xf32> to vector<128x72xf32>
    %50 = arith.truncf %49 : vector<128x72xf32> to vector<128x72xbf16>
    %c0_95 = arith.constant 0 : index
    %c0_96 = arith.constant 0 : index
    %51 = vector.load %arg3[%c0_95, %c0_96] : memref<72x8xbf16, #tpu.memory_space<vmem>>, vector<72x8xbf16>
    %cst_97 = arith.constant dense<0.000000e+00> : vector<128x8xf32>
    %52 = tpu.matmul %50, %51, %cst_97 {dimension_numbers = #tpu.dot_dimension_numbers<[1], [0], [0], [1], [0, 0, 1, 1], [], []>} : vector<128x72xbf16>, vector<72x8xbf16>, vector<128x8xf32> -> vector<128x8xf32>
    %53 = arith.addf %52, %31 : vector<128x8xf32>
    %c1_98 = arith.constant 1 : index
    %c0_99 = arith.constant 0 : index
    %54 = vector.load %arg4[%c1_98, %c0_99] : memref<2x8xf32, #tpu.memory_space<vmem>>, vector<1x8xf32>
    %55 = vector.shape_cast %54 : vector<1x8xf32> to vector<8xf32>
    %56 = vector.shape_cast %55 : vector<8xf32> to vector<1x8xf32>
    %57 = vector.broadcast %56 : vector<1x8xf32> to vector<128x8xf32>
    %58 = arith.addf %53, %57 : vector<128x8xf32>
    %cst_100 = arith.constant 0.000000e+00 : f32
    %59 = vector.broadcast %cst_100 : f32 to vector<128x8xf32>
    %60 = arith.maximumf %58, %59 : vector<128x8xf32>
    %61 = tpu.transpose %60, [1, 0] : vector<128x8xf32> -> vector<8x128xf32>
    %c0_101 = arith.constant 0 : index
    %c0_102 = arith.constant 0 : index
    %62 = vector.load %arg5[%c0_101, %c0_102] : memref<8x128xf32, #tpu.memory_space<vmem>>, vector<8x128xf32>
    tpu.vector_store %arg5[%c0_101, %c0_102], %61 {strides = array<i32>} : memref<8x128xf32, #tpu.memory_space<vmem>>, vector<8x128xf32>,
    return
  }
  func.func @transform_0(%arg0: i32) -> (i32, i32, i32, i32, i32) {
    %c0_i32 = arith.constant 0 : i32
    %c0_i32_0 = arith.constant 0 : i32
    %c0_i32_1 = arith.constant 0 : i32
    %c0_i32_2 = arith.constant 0 : i32
    %c0_i32_3 = arith.constant 0 : i32
    return %c0_i32, %arg0, %c0_i32_0, %c0_i32_1, %c0_i32_2 : i32, i32, i32, i32, i32
  }
  func.func @transform_1(%arg0: i32) -> (i32, i32) {
    %c0_i32 = arith.constant 0 : i32
    %c0_i32_0 = arith.constant 0 : i32
    %c0_i32_1 = arith.constant 0 : i32
    return %c0_i32, %c0_i32_0 : i32, i32
  }
  func.func @transform_2(%arg0: i32) -> (i32, i32) {
    %c0_i32 = arith.constant 0 : i32
    %c0_i32_0 = arith.constant 0 : i32
    %c0_i32_1 = arith.constant 0 : i32
    return %c0_i32, %c0_i32_0 : i32, i32
  }
  func.func @transform_3(%arg0: i32) -> (i32, i32) {
    %c0_i32 = arith.constant 0 : i32
    %c0_i32_0 = arith.constant 0 : i32
    %c0_i32_1 = arith.constant 0 : i32
    return %c0_i32, %c0_i32_0 : i32, i32
  }
  func.func @transform_4(%arg0: i32) -> (i32, i32) {
    %c0_i32 = arith.constant 0 : i32
    %c0_i32_0 = arith.constant 0 : i32
    return %c0_i32, %arg0 : i32, i32
  }
}

</mosaic_0001>

<llo_original>
// kernel: resblockdown_forward.1
$region0: #{resblockdown_forward.1}
  #allocation0 [shape = 'u32[]', space=smem, size = 0x4, offset = 0x4, fixed_abs, tag = 'smem constant byte address 0x4 - core index']
  #allocation1 [shape = 'u32[144,128]{1,0:T(1,128)}', space=vmem, size = 0x12000, scoped, tag = 'internal scratch']
  #allocation2 [shape = 'f32[2,10,10,8]{3,2,1,0:T(8,128)}', space=vmem, size = 0x28000, scoped, tag = 'scratch operand']
  %s0 = inlined_call_operand.vmem [shape: f32[4,2,9,9,4], index: 0, kind: input, shape index: {}]
  %s1 = inlined_call_operand.vmem [shape: bf16[36,16], index: 1, kind: input, shape index: {}]
  %s2 = inlined_call_operand.vmem [shape: bf16[72,8], index: 2, kind: input, shape index: {}]
  %s3 = inlined_call_operand.vmem [shape: f32[2,8], index: 3, kind: input, shape index: {}]
  %s4 = inlined_call_operand.vmem [shape: f32[8,128], index: 4, kind: output, shape index: {}]
  %s5 = sld [smem:[#allocation0]]
  $region26: #{resblockdown_forward.1} parent=0
    _
  %s7 = ssub.s32 1, %s5
  %s8 = scalar_select 0, %s7, %s5
  // Predicated region
  $region2: #{resblockdown_forward.1} parent=0 // pred_check
    _
  $region3: #{resblockdown_forward.1} parent=0 // pred_check_branch
    %10 = sbr.rel (0) target = $region5
  $region4: #{resblockdown_forward.1} parent=0 // pred_region
    _
  $region5: #{resblockdown_forward.1} parent=0 // pred_fallthru
    _
  // Predicated region
  $region6: #{resblockdown_forward.1} parent=0 // pred_check
    _
  $region7: #{resblockdown_forward.1} parent=0 // pred_check_branch
    %12 = sbr.rel (0) target = $region9
  $region8: #{resblockdown_forward.1} parent=0 // pred_region
    _
  $region9: #{resblockdown_forward.1} parent=0 // pred_fallthru
    _
  // Predicated region
  $region10: #{resblockdown_forward.1} parent=0 // pred_check
    _
  $region11: #{resblockdown_forward.1} parent=0 // pred_check_branch
    %14 = sbr.rel (0) target = $region13
  $region12: #{resblockdown_forward.1} parent=0 // pred_region
    _
  $region13: #{resblockdown_forward.1} parent=0 // pred_fallthru
    _
  // Predicated region
  $region14: #{resblockdown_forward.1} parent=0 // pred_check
    _
  $region15: #{resblockdown_forward.1} parent=0 // pred_check_branch
    %16 = sbr.rel (0) target = $region17
  $region16: #{resblockdown_forward.1} parent=0 // pred_region
    _
  $region17: #{resblockdown_forward.1} parent=0 // pred_fallthru
    _
  %s18 = scalar_lea.vmem %s0, 864
  %v19 = vld [vmem:[%s18] sm:$0xff]
  %v20 = vld [vmem:[%s18 + $0x10] sm:$0xff]
  %v21 = vld [vmem:[%s18 + $0x20] sm:$0xff]
  %v22 = vld [vmem:[%s18 + $0x30] sm:$0xff]
  %v23 = vld [vmem:[%s18 + $0x40] sm:$0xff]
  %v24 = vld [vmem:[%s18 + $0x50] sm:$0xff]
  %v25 = vld [vmem:[%s18 + $0x60] sm:$0xff]
  %v26 = vld [vmem:[%s18 + $0x70] sm:$0xff]
  %v27 = vld [vmem:[%s18 + $0x90] sm:$0xff]
  %v28 = vld [vmem:[%s18 + $0xa0] sm:$0xff]
  %v29 = vld [vmem:[%s18 + $0xb0] sm:$0xff]
  %v30 = vld [vmem:[%s18 + $0xc0] sm:$0xff]
  %v31 = vld [vmem:[%s18 + $0xd0] sm:$0xff]
  %v32 = vld [vmem:[%s18 + $0xe0] sm:$0xff]
  %v33 = vld [vmem:[%s18 + $0xf0] sm:$0xff]
  %v34 = vld [vmem:[%s18 + $0x100] sm:$0xff]
  %s35 = scalar_lea.vmem %s0, 576
  %v36 = vld [vmem:[%s35 + $0x1] sm:$0xff]
  %v37 = vld [vmem:[%s35 + $0x11] sm:$0xff]
  %v38 = vld [vmem:[%s35 + $0x21] sm:$0xff]
  %v39 = vld [vmem:[%s35 + $0x31] sm:$0xff]
  %v40 = vld [vmem:[%s35 + $0x41] sm:$0xff]
  %v41 = vld [vmem:[%s35 + $0x51] sm:$0xff]
  %v42 = vld [vmem:[%s35 + $0x61] sm:$0xff]
  %v43 = vld [vmem:[%s35 + $0x71] sm:$0xff]
  %v44 = vld [vmem:[%s35 + $0x91] sm:$0xff]
  %v45 = vld [vmem:[%s35 + $0xa1] sm:$0xff]
  %v46 = vld [vmem:[%s35 + $0xb1] sm:$0xff]
  %v47 = vld [vmem:[%s35 + $0xc1] sm:$0xff]
  %v48 = vld [vmem:[%s35 + $0xd1] sm:$0xff]
  %v49 = vld [vmem:[%s35 + $0xe1] sm:$0xff]
  %v50 = vld [vmem:[%s35 + $0xf1] sm:$0xff]
  %v51 = vld [vmem:[%s35 + $0x101] sm:$0xff]
  %v52 = vld [vmem:[%s18 + $0x1] sm:$0xff]
  %v53 = vld [vmem:[%s18 + $0x11] sm:$0xff]
  %v54 = vld [vmem:[%s18 + $0x21] sm:$0xff]
  %v55 = vld [vmem:[%s18 + $0x31] sm:$0xff]
  %v56 = vld [vmem:[%s18 + $0x41] sm:$0xff]
  %v57 = vld [vmem:[%s18 + $0x51] sm:$0xff]
  %v58 = vld [vmem:[%s18 + $0x61] sm:$0xff]
  %v59 = vld [vmem:[%s18 + $0x71] sm:$0xff]
  %v60 = vld [vmem:[%s18 + $0x91] sm:$0xff]
  %v61 = vld [vmem:[%s18 + $0xa1] sm:$0xff]
  %v62 = vld [vmem:[%s18 + $0xb1] sm:$0xff]
  %v63 = vld [vmem:[%s18 + $0xc1] sm:$0xff]
  %v64 = vld [vmem:[%s18 + $0xd1] sm:$0xff]
  %v65 = vld [vmem:[%s18 + $0xe1] sm:$0xff]
  %v66 = vld [vmem:[%s18 + $0xf1] sm:$0xff]
  %v67 = vld [vmem:[%s18 + $0x101] sm:$0xff]
  %s68 = scalar_lea.vmem %s0, 304
  %v69 = vld [vmem:[%s68] sm:$0xff]
  %v70 = vld [vmem:[%s68 + $0x10] sm:$0xff]
  %v71 = vld [vmem:[%s68 + $0x20] sm:$0xff]
  %v72 = vld [vmem:[%s68 + $0x30] sm:$0xff]
  %v73 = vld [vmem:[%s68 + $0x40] sm:$0xff]
  %v74 = vld [vmem:[%s68 + $0x50] sm:$0xff]
  %v75 = vld [vmem:[%s68 + $0x60] sm:$0xff]
  %v76 = vld [vmem:[%s68 + $0x70] sm:$0xff]
  %v77 = vld [vmem:[%s68 + $0x90] sm:$0xff]
  %v78 = vld [vmem:[%s68 + $0xa0] sm:$0xff]
  %v79 = vld [vmem:[%s68 + $0xb0] sm:$0xff]
  %v80 = vld [vmem:[%s68 + $0xc0] sm:$0xff]
  %v81 = vld [vmem:[%s68 + $0xd0] sm:$0xff]
  %v82 = vld [vmem:[%s68 + $0xe0] sm:$0xff]
  %v83 = vld [vmem:[%s68 + $0xf0] sm:$0xff]
  %v84 = vld [vmem:[%s68 + $0x100] sm:$0xff]
  %s85 = scalar_lea.vmem %s0, 16
  %v86 = vld [vmem:[%s85 + $0x1] sm:$0xff]
  %v87 = vld [vmem:[%s85 + $0x11] sm:$0xff]
  %v88 = vld [vmem:[%s85 + $0x21] sm:$0xff]
  %v89 = vld [vmem:[%s85 + $0x31] sm:$0xff]
  %v90 = vld [vmem:[%s85 + $0x41] sm:$0xff]
  %v91 = vld [vmem:[%s85 + $0x51] sm:$0xff]
  %v92 = vld [vmem:[%s85 + $0x61] sm:$0xff]
  %v93 = vld [vmem:[%s85 + $0x71] sm:$0xff]
  %v94 = vld [vmem:[%s85 + $0x91] sm:$0xff]
  %v95 = vld [vmem:[%s85 + $0xa1] sm:$0xff]
  %v96 = vld [vmem:[%s85 + $0xb1] sm:$0xff]
  %v97 = vld [vmem:[%s85 + $0xc1] sm:$0xff]
  %v98 = vld [vmem:[%s85 + $0xd1] sm:$0xff]
  %v99 = vld [vmem:[%s85 + $0xe1] sm:$0xff]
  %v100 = vld [vmem:[%s85 + $0xf1] sm:$0xff]
  %v101 = vld [vmem:[%s85 + $0x101] sm:$0xff]
  %v102 = vld [vmem:[%s68 + $0x1] sm:$0xff]
  %v103 = vld [vmem:[%s68 + $0x11] sm:$0xff]
  %v104 = vld [vmem:[%s68 + $0x21] sm:$0xff]
  %v105 = vld [vmem:[%s68 + $0x31] sm:$0xff]
  %v106 = vld [vmem:[%s68 + $0x41] sm:$0xff]
  %v107 = vld [vmem:[%s68 + $0x51] sm:$0xff]
  %v108 = vld [vmem:[%s68 + $0x61] sm:$0xff]
  %v109 = vld [vmem:[%s68 + $0x71] sm:$0xff]
  %v110 = vld [vmem:[%s68 + $0x91] sm:$0xff]
  %v111 = vld [vmem:[%s68 + $0xa1] sm:$0xff]
  %v112 = vld [vmem:[%s68 + $0xb1] sm:$0xff]
  %v113 = vld [vmem:[%s68 + $0xc1] sm:$0xff]
  %v114 = vld [vmem:[%s68 + $0xd1] sm:$0xff]
  %v115 = vld [vmem:[%s68 + $0xe1] sm:$0xff]
  %v116 = vld [vmem:[%s68 + $0xf1] sm:$0xff]
  %v117 = vld [vmem:[%s68 + $0x101] sm:$0xff]
  %s118 = scalar_lea.vmem %s0, 880
  %v119 = vld [vmem:[%s118] sm:$0xff]
  %v120 = vld [vmem:[%s118 + $0x10] sm:$0xff]
  %v121 = vld [vmem:[%s118 + $0x20] sm:$0xff]
  %v122 = vld [vmem:[%s118 + $0x30] sm:$0xff]
  %v123 = vld [vmem:[%s118 + $0x40] sm:$0xff]
  %v124 = vld [vmem:[%s118 + $0x50] sm:$0xff]
  %v125 = vld [vmem:[%s118 + $0x60] sm:$0xff]
  %v126 = vld [vmem:[%s118 + $0x70] sm:$0xff]
  %v127 = vld [vmem:[%s118 + $0x90] sm:$0xff]
  %v128 = vld [vmem:[%s118 + $0xa0] sm:$0xff]
  %v129 = vld [vmem:[%s118 + $0xb0] sm:$0xff]
  %v130 = vld [vmem:[%s118 + $0xc0] sm:$0xff]
  %v131 = vld [vmem:[%s118 + $0xd0] sm:$0xff]
  %v132 = vld [vmem:[%s118 + $0xe0] sm:$0xff]
  %v133 = vld [vmem:[%s118 + $0xf0] sm:$0xff]
  %v134 = vld [vmem:[%s118 + $0x100] sm:$0xff]
  %s135 = scalar_lea.vmem %s0, 592
  %v136 = vld [vmem:[%s135 + $0x1] sm:$0xff]
  %v137 = vld [vmem:[%s135 + $0x11] sm:$0xff]
  %v138 = vld [vmem:[%s135 + $0x21] sm:$0xff]
  %v139 = vld [vmem:[%s135 + $0x31] sm:$0xff]
  %v140 = vld [vmem:[%s135 + $0x41] sm:$0xff]
  %v141 = vld [vmem:[%s135 + $0x51] sm:$0xff]
  %v142 = vld [vmem:[%s135 + $0x61] sm:$0xff]
  %v143 = vld [vmem:[%s135 + $0x71] sm:$0xff]
  %v144 = vld [vmem:[%s135 + $0x91] sm:$0xff]
  %v145 = vld [vmem:[%s135 + $0xa1] sm:$0xff]
  %v146 = vld [vmem:[%s135 + $0xb1] sm:$0xff]
  %v147 = vld [vmem:[%s135 + $0xc1] sm:$0xff]
  %v148 = vld [vmem:[%s135 + $0xd1] sm:$0xff]
  %v149 = vld [vmem:[%s135 + $0xe1] sm:$0xff]
  %v150 = vld [vmem:[%s135 + $0xf1] sm:$0xff]
  %v151 = vld [vmem:[%s135 + $0x101] sm:$0xff]
  %v152 = vld [vmem:[%s118 + $0x1] sm:$0xff]
  %v153 = vld [vmem:[%s118 + $0x11] sm:$0xff]
  %v154 = vld [vmem:[%s118 + $0x21] sm:$0xff]
  %v155 = vld [vmem:[%s118 + $0x31] sm:$0xff]
  %v156 = vld [vmem:[%s118 + $0x41] sm:$0xff]
  %v157 = vld [vmem:[%s118 + $0x51] sm:$0xff]
  %v158 = vld [vmem:[%s118 + $0x61] sm:$0xff]
  %v159 = vld [vmem:[%s118 + $0x71] sm:$0xff]
  %v160 = vld [vmem:[%s118 + $0x91] sm:$0xff]
  %v161 = vld [vmem:[%s118 + $0xa1] sm:$0xff]
  %v162 = vld [vmem:[%s118 + $0xb1] sm:$0xff]
  %v163 = vld [vmem:[%s118 + $0xc1] sm:$0xff]
  %v164 = vld [vmem:[%s118 + $0xd1] sm:$0xff]
  %v165 = vld [vmem:[%s118 + $0xe1] sm:$0xff]
  %v166 = vld [vmem:[%s118 + $0xf1] sm:$0xff]
  %v167 = vld [vmem:[%s118 + $0x101] sm:$0xff]
  %184 = vrot.lane.b32.xlu0 %v36, 4
  %v185 = vpop.permute.xlu0 %184
  %186 = vrot.lane.b32.xlu0 %v37, 4
  %v187 = vpop.permute.xlu0 %186
  %188 = vrot.lane.b32.xlu0 %v38, 4
  %v189 = vpop.permute.xlu0 %188
  %190 = vrot.lane.b32.xlu0 %v39, 4
  %v191 = vpop.permute.xlu0 %190
  %192 = vrot.lane.b32.xlu0 %v40, 4
  %v193 = vpop.permute.xlu0 %192
  %194 = vrot.lane.b32.xlu0 %v41, 4
  %v195 = vpop.permute.xlu0 %194
  %196 = vrot.lane.b32.xlu0 %v42, 4
  %v197 = vpop.permute.xlu0 %196
  %198 = vrot.lane.b32.xlu0 %v43, 4
  %v199 = vpop.permute.xlu0 %198
  %200 = vrot.lane.b32.xlu0 %v44, 4
  %v201 = vpop.permute.xlu0 %200
  %202 = vrot.lane.b32.xlu0 %v45, 4
  %v203 = vpop.permute.xlu0 %202
  %204 = vrot.lane.b32.xlu0 %v46, 4
  %v205 = vpop.permute.xlu0 %204
  %206 = vrot.lane.b32.xlu0 %v47, 4
  %v207 = vpop.permute.xlu0 %206
  %208 = vrot.lane.b32.xlu0 %v48, 4
  %v209 = vpop.permute.xlu0 %208
  %210 = vrot.lane.b32.xlu0 %v49, 4
  %v211 = vpop.permute.xlu0 %210
  %212 = vrot.lane.b32.xlu0 %v50, 4
  %v213 = vpop.permute.xlu0 %212
  %214 = vrot.lane.b32.xlu0 %v51, 4
  %v215 = vpop.permute.xlu0 %214
  %248 = vrot.lane.b32.xlu0 %v52, 8
  %v249 = vpop.permute.xlu0 %248
  %250 = vrot.lane.b32.xlu0 %v53, 8
  %v251 = vpop.permute.xlu0 %250
  %252 = vrot.lane.b32.xlu0 %v54, 8
  %v253 = vpop.permute.xlu0 %252
  %254 = vrot.lane.b32.xlu0 %v55, 8
  %v255 = vpop.permute.xlu0 %254
  %256 = vrot.lane.b32.xlu0 %v56, 8
  %v257 = vpop.permute.xlu0 %256
  %258 = vrot.lane.b32.xlu0 %v57, 8
  %v259 = vpop.permute.xlu0 %258
  %260 = vrot.lane.b32.xlu0 %v58, 8
  %v261 = vpop.permute.xlu0 %260
  %262 = vrot.lane.b32.xlu0 %v59, 8
  %v263 = vpop.permute.xlu0 %262
  %264 = vrot.lane.b32.xlu0 %v60, 8
  %v265 = vpop.permute.xlu0 %264
  %266 = vrot.lane.b32.xlu0 %v61, 8
  %v267 = vpop.permute.xlu0 %266
  %268 = vrot.lane.b32.xlu0 %v62, 8
  %v269 = vpop.permute.xlu0 %268
  %270 = vrot.lane.b32.xlu0 %v63, 8
  %v271 = vpop.permute.xlu0 %270
  %272 = vrot.lane.b32.xlu0 %v64, 8
  %v273 = vpop.permute.xlu0 %272
  %274 = vrot.lane.b32.xlu0 %v65, 8
  %v275 = vpop.permute.xlu0 %274
  %276 = vrot.lane.b32.xlu0 %v66, 8
  %v277 = vpop.permute.xlu0 %276
  %278 = vrot.lane.b32.xlu0 %v67, 8
  %v279 = vpop.permute.xlu0 %278
  %312 = vrot.lane.b32.xlu0 %v69, 12
  %v313 = vpop.permute.xlu0 %312
  %314 = vrot.lane.b32.xlu0 %v70, 12
  %v315 = vpop.permute.xlu0 %314
  %316 = vrot.lane.b32.xlu0 %v71, 12
  %v317 = vpop.permute.xlu0 %316
  %318 = vrot.lane.b32.xlu0 %v72, 12
  %v319 = vpop.permute.xlu0 %318
  %320 = vrot.lane.b32.xlu0 %v73, 12
  %v321 = vpop.permute.xlu0 %320
  %322 = vrot.lane.b32.xlu0 %v74, 12
  %v323 = vpop.permute.xlu0 %322
  %324 = vrot.lane.b32.xlu0 %v75, 12
  %v325 = vpop.permute.xlu0 %324
  %326 = vrot.lane.b32.xlu0 %v76, 12
  %v327 = vpop.permute.xlu0 %326
  %328 = vrot.lane.b32.xlu0 %v77, 12
  %v329 = vpop.permute.xlu0 %328
  %330 = vrot.lane.b32.xlu0 %v78, 12
  %v331 = vpop.permute.xlu0 %330
  %332 = vrot.lane.b32.xlu0 %v79, 12
  %v333 = vpop.permute.xlu0 %332
  %334 = vrot.lane.b32.xlu0 %v80, 12
  %v335 = vpop.permute.xlu0 %334
  %336 = vrot.lane.b32.xlu0 %v81, 12
  %v337 = vpop.permute.xlu0 %336
  %338 = vrot.lane.b32.xlu0 %v82, 12
  %v339 = vpop.permute.xlu0 %338
  %340 = vrot.lane.b32.xlu0 %v83, 12
  %v341 = vpop.permute.xlu0 %340
  %342 = vrot.lane.b32.xlu0 %v84, 12
  %v343 = vpop.permute.xlu0 %342
  %376 = vrot.lane.b32.xlu0 %v86, 16
  %v377 = vpop.permute.xlu0 %376
  %378 = vrot.lane.b32.xlu0 %v87, 16
  %v379 = vpop.permute.xlu0 %378
  %380 = vrot.lane.b32.xlu0 %v88, 16
  %v381 = vpop.permute.xlu0 %380
  %382 = vrot.lane.b32.xlu0 %v89, 16
  %v383 = vpop.permute.xlu0 %382
  %384 = vrot.lane.b32.xlu0 %v90, 16
  %v385 = vpop.permute.xlu0 %384
  %386 = vrot.lane.b32.xlu0 %v91, 16
  %v387 = vpop.permute.xlu0 %386
  %388 = vrot.lane.b32.xlu0 %v92, 16
  %v389 = vpop.permute.xlu0 %388
  %390 = vrot.lane.b32.xlu0 %v93, 16
  %v391 = vpop.permute.xlu0 %390
  %392 = vrot.lane.b32.xlu0 %v94, 16
  %v393 = vpop.permute.xlu0 %392
  %394 = vrot.lane.b32.xlu0 %v95, 16
  %v395 = vpop.permute.xlu0 %394
  %396 = vrot.lane.b32.xlu0 %v96, 16
  %v397 = vpop.permute.xlu0 %396
  %398 = vrot.lane.b32.xlu0 %v97, 16
  %v399 = vpop.permute.xlu0 %398
  %400 = vrot.lane.b32.xlu0 %v98, 16
  %v401 = vpop.permute.xlu0 %400
  %402 = vrot.lane.b32.xlu0 %v99, 16
  %v403 = vpop.permute.xlu0 %402
  %404 = vrot.lane.b32.xlu0 %v100, 16
  %v405 = vpop.permute.xlu0 %404
  %406 = vrot.lane.b32.xlu0 %v101, 16
  %v407 = vpop.permute.xlu0 %406
  %440 = vrot.lane.b32.xlu0 %v102, 20
  %v441 = vpop.permute.xlu0 %440
  %442 = vrot.lane.b32.xlu0 %v103, 20
  %v443 = vpop.permute.xlu0 %442
  %444 = vrot.lane.b32.xlu0 %v104, 20
  %v445 = vpop.permute.xlu0 %444
  %446 = vrot.lane.b32.xlu0 %v105, 20
  %v447 = vpop.permute.xlu0 %446
  %448 = vrot.lane.b32.xlu0 %v106, 20
  %v449 = vpop.permute.xlu0 %448
  %450 = vrot.lane.b32.xlu0 %v107, 20
  %v451 = vpop.permute.xlu0 %450
  %452 = vrot.lane.b32.xlu0 %v108, 20
  %v453 = vpop.permute.xlu0 %452
  %454 = vrot.lane.b32.xlu0 %v109, 20
  %v455 = vpop.permute.xlu0 %454
  %456 = vrot.lane.b32.xlu0 %v110, 20
  %v457 = vpop.permute.xlu0 %456
  %458 = vrot.lane.b32.xlu0 %v111, 20
  %v459 = vpop.permute.xlu0 %458
  %460 = vrot.lane.b32.xlu0 %v112, 20
  %v461 = vpop.permute.xlu0 %460
  %462 = vrot.lane.b32.xlu0 %v113, 20
  %v463 = vpop.permute.xlu0 %462
  %464 = vrot.lane.b32.xlu0 %v114, 20
  %v465 = vpop.permute.xlu0 %464
  %466 = vrot.lane.b32.xlu0 %v115, 20
  %v467 = vpop.permute.xlu0 %466
  %468 = vrot.lane.b32.xlu0 %v116, 20
  %v469 = vpop.permute.xlu0 %468
  %470 = vrot.lane.b32.xlu0 %v117, 20
  %v471 = vpop.permute.xlu0 %470
  %504 = vrot.lane.b32.xlu0 %v119, 24
  %v505 = vpop.permute.xlu0 %504
  %506 = vrot.lane.b32.xlu0 %v120, 24
  %v507 = vpop.permute.xlu0 %506
  %508 = vrot.lane.b32.xlu0 %v121, 24
  %v509 = vpop.permute.xlu0 %508
  %510 = vrot.lane.b32.xlu0 %v122, 24
  %v511 = vpop.permute.xlu0 %510
  %512 = vrot.lane.b32.xlu0 %v123, 24
  %v513 = vpop.permute.xlu0 %512
  %514 = vrot.lane.b32.xlu0 %v124, 24
  %v515 = vpop.permute.xlu0 %514
  %516 = vrot.lane.b32.xlu0 %v125, 24
  %v517 = vpop.permute.xlu0 %516
  %518 = vrot.lane.b32.xlu0 %v126, 24
  %v519 = vpop.permute.xlu0 %518
  %520 = vrot.lane.b32.xlu0 %v127, 24
  %v521 = vpop.permute.xlu0 %520
  %522 = vrot.lane.b32.xlu0 %v128, 24
  %v523 = vpop.permute.xlu0 %522
  %524 = vrot.lane.b32.xlu0 %v129, 24
  %v525 = vpop.permute.xlu0 %524
  %526 = vrot.lane.b32.xlu0 %v130, 24
  %v527 = vpop.permute.xlu0 %526
  %528 = vrot.lane.b32.xlu0 %v131, 24
  %v529 = vpop.permute.xlu0 %528
  %530 = vrot.lane.b32.xlu0 %v132, 24
  %v531 = vpop.permute.xlu0 %530
  %532 = vrot.lane.b32.xlu0 %v133, 24
  %v533 = vpop.permute.xlu0 %532
  %534 = vrot.lane.b32.xlu0 %v134, 24
  %v535 = vpop.permute.xlu0 %534
  %568 = vrot.lane.b32.xlu0 %v136, 28
  %v569 = vpop.permute.xlu0 %568
  %570 = vrot.lane.b32.xlu0 %v137, 28
  %v571 = vpop.permute.xlu0 %570
  %572 = vrot.lane.b32.xlu0 %v138, 28
  %v573 = vpop.permute.xlu0 %572
  %574 = vrot.lane.b32.xlu0 %v139, 28
  %v575 = vpop.permute.xlu0 %574
  %576 = vrot.lane.b32.xlu0 %v140, 28
  %v577 = vpop.permute.xlu0 %576
  %578 = vrot.lane.b32.xlu0 %v141, 28
  %v579 = vpop.permute.xlu0 %578
  %580 = vrot.lane.b32.xlu0 %v142, 28
  %v581 = vpop.permute.xlu0 %580
  %582 = vrot.lane.b32.xlu0 %v143, 28
  %v583 = vpop.permute.xlu0 %582
  %584 = vrot.lane.b32.xlu0 %v144, 28
  %v585 = vpop.permute.xlu0 %584
  %586 = vrot.lane.b32.xlu0 %v145, 28
  %v587 = vpop.permute.xlu0 %586
  %588 = vrot.lane.b32.xlu0 %v146, 28
  %v589 = vpop.permute.xlu0 %588
  %590 = vrot.lane.b32.xlu0 %v147, 28
  %v591 = vpop.permute.xlu0 %590
  %592 = vrot.lane.b32.xlu0 %v148, 28
  %v593 = vpop.permute.xlu0 %592
  %594 = vrot.lane.b32.xlu0 %v149, 28
  %v595 = vpop.permute.xlu0 %594
  %596 = vrot.lane.b32.xlu0 %v150, 28
  %v597 = vpop.permute.xlu0 %596
  %598 = vrot.lane.b32.xlu0 %v151, 28
  %v599 = vpop.permute.xlu0 %598
  %632 = vrot.lane.b32.xlu0 %v152, 32
  %v633 = vpop.permute.xlu0 %632
  %634 = vrot.lane.b32.xlu0 %v153, 32
  %v635 = vpop.permute.xlu0 %634
  %636 = vrot.lane.b32.xlu0 %v154, 32
  %v637 = vpop.permute.xlu0 %636
  %638 = vrot.lane.b32.xlu0 %v155, 32
  %v639 = vpop.permute.xlu0 %638
  %640 = vrot.lane.b32.xlu0 %v156, 32
  %v641 = vpop.permute.xlu0 %640
  %642 = vrot.lane.b32.xlu0 %v157, 32
  %v643 = vpop.permute.xlu0 %642
  %644 = vrot.lane.b32.xlu0 %v158, 32
  %v645 = vpop.permute.xlu0 %644
  %646 = vrot.lane.b32.xlu0 %v159, 32
  %v647 = vpop.permute.xlu0 %646
  %648 = vrot.lane.b32.xlu0 %v160, 32
  %v649 = vpop.permute.xlu0 %648
  %650 = vrot.lane.b32.xlu0 %v161, 32
  %v651 = vpop.permute.xlu0 %650
  %652 = vrot.lane.b32.xlu0 %v162, 32
  %v653 = vpop.permute.xlu0 %652
  %654 = vrot.lane.b32.xlu0 %v163, 32
  %v655 = vpop.permute.xlu0 %654
  %656 = vrot.lane.b32.xlu0 %v164, 32
  %v657 = vpop.permute.xlu0 %656
  %658 = vrot.lane.b32.xlu0 %v165, 32
  %v659 = vpop.permute.xlu0 %658
  %660 = vrot.lane.b32.xlu0 %v166, 32
  %v661 = vpop.permute.xlu0 %660
  %662 = vrot.lane.b32.xlu0 %v167, 32
  %v663 = vpop.permute.xlu0 %662
  %vm680 = vcmask 31744
  %v681 = vsel %vm680, %v19, %v185
  %v682 = vsel %vm680, %v20, %v187
  %v683 = vsel %vm680, %v21, %v189
  %v684 = vsel %vm680, %v22, %v191
  %v685 = vsel %vm680, %v23, %v193
  %v686 = vsel %vm680, %v24, %v195
  %v687 = vsel %vm680, %v25, %v197
  %v688 = vsel %vm680, %v26, %v199
  %v689 = vsel %vm680, %v27, %v201
  %v690 = vsel %vm680, %v28, %v203
  %v691 = vsel %vm680, %v29, %v205
  %v692 = vsel %vm680, %v30, %v207
  %v693 = vsel %vm680, %v31, %v209
  %v694 = vsel %vm680, %v32, %v211
  %v695 = vsel %vm680, %v33, %v213
  %v696 = vsel %vm680, %v34, %v215
  %vm697 = vcmask 64512
  %v698 = vsel %vm697, %v681, %v249
  %v699 = vsel %vm697, %v682, %v251
  %v700 = vsel %vm697, %v683, %v253
  %v701 = vsel %vm697, %v684, %v255
  %v702 = vsel %vm697, %v685, %v257
  %v703 = vsel %vm697, %v686, %v259
  %v704 = vsel %vm697, %v687, %v261
  %v705 = vsel %vm697, %v688, %v263
  %v706 = vsel %vm697, %v689, %v265
  %v707 = vsel %vm697, %v690, %v267
  %v708 = vsel %vm697, %v691, %v269
  %v709 = vsel %vm697, %v692, %v271
  %v710 = vsel %vm697, %v693, %v273
  %v711 = vsel %vm697, %v694, %v275
  %v712 = vsel %vm697, %v695, %v277
  %v713 = vsel %vm697, %v696, %v279
  %vm714 = vcmask 97280
  %v715 = vsel %vm714, %v698, %v313
  %v716 = vsel %vm714, %v699, %v315
  %v717 = vsel %vm714, %v700, %v317
  %v718 = vsel %vm714, %v701, %v319
  %v719 = vsel %vm714, %v702, %v321
  %v720 = vsel %vm714, %v703, %v323
  %v721 = vsel %vm714, %v704, %v325
  %v722 = vsel %vm714, %v705, %v327
  %v723 = vsel %vm714, %v706, %v329
  %v724 = vsel %vm714, %v707, %v331
  %v725 = vsel %vm714, %v708, %v333
  %v726 = vsel %vm714, %v709, %v335
  %v727 = vsel %vm714, %v710, %v337
  %v728 = vsel %vm714, %v711, %v339
  %v729 = vsel %vm714, %v712, %v341
  %v730 = vsel %vm714, %v713, %v343
  %vm731 = vcmask 130048
  %v732 = vsel %vm731, %v715, %v377
  %v733 = vsel %vm731, %v716, %v379
  %v734 = vsel %vm731, %v717, %v381
  %v735 = vsel %vm731, %v718, %v383
  %v736 = vsel %vm731, %v719, %v385
  %v737 = vsel %vm731, %v720, %v387
  %v738 = vsel %vm731, %v721, %v389
  %v739 = vsel %vm731, %v722, %v391
  %v740 = vsel %vm731, %v723, %v393
  %v741 = vsel %vm731, %v724, %v395
  %v742 = vsel %vm731, %v725, %v397
  %v743 = vsel %vm731, %v726, %v399
  %v744 = vsel %vm731, %v727, %v401
  %v745 = vsel %vm731, %v728, %v403
  %v746 = vsel %vm731, %v729, %v405
  %v747 = vsel %vm731, %v730, %v407
  %vm748 = vcmask 162816
  %v749 = vsel %vm748, %v732, %v441
  %v750 = vsel %vm748, %v733, %v443
  %v751 = vsel %vm748, %v734, %v445
  %v752 = vsel %vm748, %v735, %v447
  %v753 = vsel %vm748, %v736, %v449
  %v754 = vsel %vm748, %v737, %v451
  %v755 = vsel %vm748, %v738, %v453
  %v756 = vsel %vm748, %v739, %v455
  %v757 = vsel %vm748, %v740, %v457
  %v758 = vsel %vm748, %v741, %v459
  %v759 = vsel %vm748, %v742, %v461
  %v760 = vsel %vm748, %v743, %v463
  %v761 = vsel %vm748, %v744, %v465
  %v762 = vsel %vm748, %v745, %v467
  %v763 = vsel %vm748, %v746, %v469
  %v764 = vsel %vm748, %v747, %v471
  %vm765 = vcmask 195584
  %v766 = vsel %vm765, %v749, %v505
  %v767 = vsel %vm765, %v750, %v507
  %v768 = vsel %vm765, %v751, %v509
  %v769 = vsel %vm765, %v752, %v511
  %v770 = vsel %vm765, %v753, %v513
  %v771 = vsel %vm765, %v754, %v515
  %v772 = vsel %vm765, %v755, %v517
  %v773 = vsel %vm765, %v756, %v519
  %v774 = vsel %vm765, %v757, %v521
  %v775 = vsel %vm765, %v758, %v523
  %v776 = vsel %vm765, %v759, %v525
  %v777 = vsel %vm765, %v760, %v527
  %v778 = vsel %vm765, %v761, %v529
  %v779 = vsel %vm765, %v762, %v531
  %v780 = vsel %vm765, %v763, %v533
  %v781 = vsel %vm765, %v764, %v535
  %vm782 = vcmask 228352
  %v783 = vsel %vm782, %v766, %v569
  %v784 = vsel %vm782, %v767, %v571
  %v785 = vsel %vm782, %v768, %v573
  %v786 = vsel %vm782, %v769, %v575
  %v787 = vsel %vm782, %v770, %v577
  %v788 = vsel %vm782, %v771, %v579
  %v789 = vsel %vm782, %v772, %v581
  %v790 = vsel %vm782, %v773, %v583
  %v791 = vsel %vm782, %v774, %v585
  %v792 = vsel %vm782, %v775, %v587
  %v793 = vsel %vm782, %v776, %v589
  %v794 = vsel %vm782, %v777, %v591
  %v795 = vsel %vm782, %v778, %v593
  %v796 = vsel %vm782, %v779, %v595
  %v797 = vsel %vm782, %v780, %v597
  %v798 = vsel %vm782, %v781, %v599
  %vm799 = vcmask 261120
  %v800 = vsel %vm799, %v783, %v633
  %v801 = vsel %vm799, %v784, %v635
  %v802 = vsel %vm799, %v785, %v637
  %v803 = vsel %vm799, %v786, %v639
  %v804 = vsel %vm799, %v787, %v641
  %v805 = vsel %vm799, %v788, %v643
  %v806 = vsel %vm799, %v789, %v645
  %v807 = vsel %vm799, %v790, %v647
  %v808 = vsel %vm799, %v791, %v649
  %v809 = vsel %vm799, %v792, %v651
  %v810 = vsel %vm799, %v793, %v653
  %v811 = vsel %vm799, %v794, %v655
  %v812 = vsel %vm799, %v795, %v657
  %v813 = vsel %vm799, %v796, %v659
  %v814 = vsel %vm799, %v797, %v661
  %v815 = vsel %vm799, %v798, %v663
  %v816 = vpack.c.bf16 %v801, %v800
  %v817 = vpack.c.bf16 %v803, %v802
  %v818 = vpack.c.bf16 %v805, %v804
  %v819 = vpack.c.bf16 %v807, %v806
  %v820 = vpack.c.bf16 %v809, %v808
  %v821 = vpack.c.bf16 %v811, %v810
  %v822 = vpack.c.bf16 %v813, %v812
  %v823 = vpack.c.bf16 %v815, %v814
  %v824 = vld [vmem:[%s1] sm:$0xf]
  %v825 = vld [vmem:[%s1 + $0x4] sm:$0xf]
  %v826 = vld [vmem:[%s1 + $0x8] sm:$0xf]
  %v827 = vld [vmem:[%s1 + $0xc] sm:$0xf]
  %v828 = vld [vmem:[%s1 + $0x10] sm:$0x3]
  %v834 = vunpack.c.l.b16 %v824
  %v835 = vunpack.c.l.b16 %v825
  %v836 = vunpack.c.l.b16 %v826
  %v837 = vunpack.c.l.b16 %v827
  %v838 = vunpack.c.l.b16 %v828
  %v839 = vpack.c.b16 %v835, %v834
  %v840 = vpack.c.b16 %v837, %v836
  %v841 = vpack.c.b16 %v838, %v838
  %vm844 = vcmask 293888
  %v846 = vsel %vm844, %v816, 0
  %v849 = vsel %vm844, %v817, 0
  %v852 = vsel %vm844, %v818, 0
  %v855 = vsel %vm844, %v819, 0
  %v858 = vsel %vm844, %v820, 0
  %v861 = vsel %vm844, %v821, 0
  %v864 = vsel %vm844, %v822, 0
  %v867 = vsel %vm844, %v823, 0
  %vm869 = vcmask 1041408
  %v871 = vsel %vm869, %v841, 0
  %873 = vmatprep.subr.bf16.mxu0 0
  %874 = vmatpush1.bf16.msra.mxu0 %v839
  %875 = vmatprep.subr.bf16.mxu0 0
  %876 = vmatpush1.bf16.msra.mxu0 %v840
  %877 = vmatprep.subr.bf16.mxu0 0
  %878 = vmatpush1.bf16.msra.mxu0 %v871
  %879 = vmatprep.subr.bf16.mxu0 0
  %880 = vmatpush1.bf16.msra.mxu0 0
  %881 = vmatprep.subr.bf16.mxu0 0
  %882 = vmatpush1.bf16.msra.mxu0 0
  %883 = vmatprep.subr.bf16.mxu0 0
  %884 = vmatpush1.bf16.msra.mxu0 0
  %885 = vmatprep.subr.bf16.mxu0 0
  %886 = vmatpush1.bf16.msra.mxu0 0
  %887 = vmatprep.subr.bf16.mxu0 0
  %888 = vmatpush1.bf16.msra.mxu0 0
  %889 = vmatprep.subr.bf16.mxu0 0
  %890 = vmatpush1.bf16.msra.mxu0 0
  %891 = vmatprep.subr.bf16.mxu0 0
  %892 = vmatpush1.bf16.msra.mxu0 0
  %893 = vmatprep.subr.bf16.mxu0 0
  %894 = vmatpush1.bf16.msra.mxu0 0
  %895 = vmatprep.subr.bf16.mxu0 0
  %896 = vmatpush1.bf16.msra.mxu0 0
  %897 = vmatprep.subr.bf16.mxu0 0
  %898 = vmatpush1.bf16.msra.mxu0 0
  %899 = vmatprep.subr.bf16.mxu0 0
  %900 = vmatpush1.bf16.msra.mxu0 0
  %901 = vmatprep.subr.bf16.mxu0 0
  %902 = vmatpush1.bf16.msra.mxu0 0
  %903 = vmatprep.subr.bf16.mxu0 0
  %904 = vmatpush1.bf16.msra.mxu0 0
  %905 = vmatprep.mubr.bf16.mxu0 0
  %906 = vmatmul.mubr.bf16.gmra.mrb[0].mxu0 %v846
  %v907 = vpop.f32.mrb[0].mxu0
  %v908 = vadd.f32 0.0, %v907
  %v909 = vpop.f32.mrb[0].mxu0
  %v910 = vpop.f32.mrb[0].mxu0
  %v911 = vadd.f32 0.0, %v910
  %v912 = vpop.f32.mrb[0].mxu0
  %913 = vmatprep.mubr.bf16.mxu0 0
  %914 = vmatmul.mubr.bf16.gmra.mrb[0].mxu0 %v849
  %v915 = vpop.f32.mrb[0].mxu0
  %v916 = vadd.f32 0.0, %v915
  %v917 = vpop.f32.mrb[0].mxu0
  %v918 = vpop.f32.mrb[0].mxu0
  %v919 = vadd.f32 0.0, %v918
  %v920 = vpop.f32.mrb[0].mxu0
  %921 = vmatprep.mubr.bf16.mxu0 0
  %922 = vmatmul.mubr.bf16.gmra.mrb[0].mxu0 %v852
  %v923 = vpop.f32.mrb[0].mxu0
  %v924 = vadd.f32 0.0, %v923
  %v925 = vpop.f32.mrb[0].mxu0
  %v926 = vpop.f32.mrb[0].mxu0
  %v927 = vadd.f32 0.0, %v926
  %v928 = vpop.f32.mrb[0].mxu0
  %929 = vmatprep.mubr.bf16.mxu0 0
  %930 = vmatmul.mubr.bf16.gmra.mrb[0].mxu0 %v855
  %v931 = vpop.f32.mrb[0].mxu0
  %v932 = vadd.f32 0.0, %v931
  %v933 = vpop.f32.mrb[0].mxu0
  %v934 = vpop.f32.mrb[0].mxu0
  %v935 = vadd.f32 0.0, %v934
  %v936 = vpop.f32.mrb[0].mxu0
  %937 = vmatprep.mubr.bf16.mxu0 0
  %938 = vmatmul.mubr.bf16.gmra.mrb[0].mxu0 %v858
  %v939 = vpop.f32.mrb[0].mxu0
  %v940 = vadd.f32 0.0, %v939
  %v941 = vpop.f32.mrb[0].mxu0
  %v942 = vpop.f32.mrb[0].mxu0
  %v943 = vadd.f32 0.0, %v942
  %v944 = vpop.f32.mrb[0].mxu0
  %945 = vmatprep.mubr.bf16.mxu0 0
  %946 = vmatmul.mubr.bf16.gmra.mrb[0].mxu0 %v861
  %v947 = vpop.f32.mrb[0].mxu0
  %v948 = vadd.f32 0.0, %v947
  %v949 = vpop.f32.mrb[0].mxu0
  %v950 = vpop.f32.mrb[0].mxu0
  %v951 = vadd.f32 0.0, %v950
  %v952 = vpop.f32.mrb[0].mxu0
  %953 = vmatprep.mubr.bf16.mxu0 0
  %954 = vmatmul.mubr.bf16.gmra.mrb[0].mxu0 %v864
  %v955 = vpop.f32.mrb[0].mxu0
  %v956 = vadd.f32 0.0, %v955
  %v957 = vpop.f32.mrb[0].mxu0
  %v958 = vpop.f32.mrb[0].mxu0
  %v959 = vadd.f32 0.0, %v958
  %v960 = vpop.f32.mrb[0].mxu0
  %961 = vmatprep.mubr.bf16.mxu0 0
  %962 = vmatmul.mubr.bf16.gmra.mrb[0].mxu0 %v867
  %v963 = vpop.f32.mrb[0].mxu0
  %v964 = vadd.f32 0.0, %v963
  %v965 = vpop.f32.mrb[0].mxu0
  %v966 = vpop.f32.mrb[0].mxu0
  %v967 = vadd.f32 0.0, %v966
  %v968 = vpop.f32.mrb[0].mxu0
  %969 = vdwg.mxu0
  %v970 = vld [vmem:[%s3] sm:$0x1]
  %v971 = vlaneseq
  %v972 = vshrl.u32 %v971, 7
  %v973 = vsub.s32 0, %v972
  %v974 = vrot.slane %v970, %v973
  %v975 = vadd.f32 %v908, %v974
  %v976 = vadd.f32 %v911, %v974
  %v977 = vadd.f32 %v916, %v974
  %v978 = vadd.f32 %v919, %v974
  %v979 = vadd.f32 %v924, %v974
  %v980 = vadd.f32 %v927, %v974
  %v981 = vadd.f32 %v932, %v974
  %v982 = vadd.f32 %v935, %v974
  %v983 = vadd.f32 %v940, %v974
  %v984 = vadd.f32 %v943, %v974
  %v985 = vadd.f32 %v948, %v974
  %v986 = vadd.f32 %v951, %v974
  %v987 = vadd.f32 %v956, %v974
  %v988 = vadd.f32 %v959, %v974
  %v989 = vadd.f32 %v964, %v974
  %v990 = vadd.f32 %v967, %v974
  %v991 = vmax.f32 %v975, 0.0
  %v992 = vmax.f32 %v976, 0.0
  %v993 = vmax.f32 %v977, 0.0
  %v994 = vmax.f32 %v978, 0.0
  %v995 = vmax.f32 %v979, 0.0
  %v996 = vmax.f32 %v980, 0.0
  %v997 = vmax.f32 %v981, 0.0
  %v998 = vmax.f32 %v982, 0.0
  %v999 = vmax.f32 %v983, 0.0
  %v1000 = vmax.f32 %v984, 0.0
  %v1001 = vmax.f32 %v985, 0.0
  %v1002 = vmax.f32 %v986, 0.0
  %v1003 = vmax.f32 %v987, 0.0
  %v1004 = vmax.f32 %v988, 0.0
  %v1005 = vmax.f32 %v989, 0.0
  %v1006 = vmax.f32 %v990, 0.0
  %v1023 = vrot.slane %v991, 7
  %v1024 = vrot.slane %v992, 7
  %v1025 = vrot.slane %v993, 7
  %v1026 = vrot.slane %v994, 7
  %v1027 = vrot.slane %v995, 7
  %v1028 = vrot.slane %v996, 7
  %v1029 = vrot.slane %v997, 7
  %v1030 = vrot.slane %v998, 7
  %v1031 = vrot.slane %v999, 7
  %v1032 = vrot.slane %v1000, 7
  %v1033 = vrot.slane %v1001, 7
  %v1034 = vrot.slane %v1002, 7
  %v1035 = vrot.slane %v1003, 7
  %v1036 = vrot.slane %v1004, 7
  %v1037 = vrot.slane %v1005, 7
  %v1038 = vrot.slane %v1006, 7
  %vm1055 = vcmask 1040384
  %v1056 = vsel %vm1055, 0.0, %v1023
  %v1057 = vsel %vm1055, 0.0, %v1024
  %v1058 = vsel %vm1055, 0.0, %v1025
  %v1059 = vsel %vm1055, 0.0, %v1026
  %v1060 = vsel %vm1055, 0.0, %v1027
  %v1061 = vsel %vm1055, 0.0, %v1028
  %v1062 = vsel %vm1055, 0.0, %v1029
  %v1063 = vsel %vm1055, 0.0, %v1030
  %v1064 = vsel %vm1055, 0.0, %v1031
  %v1065 = vsel %vm1055, 0.0, %v1032
  %v1066 = vsel %vm1055, 0.0, %v1033
  %v1067 = vsel %vm1055, 0.0, %v1034
  %v1068 = vsel %vm1055, 0.0, %v1035
  %v1069 = vsel %vm1055, 0.0, %v1036
  %v1070 = vsel %vm1055, 0.0, %v1037
  %v1071 = vsel %vm1055, 0.0, %v1038
  %v1072 = vsel %vm1055, %v1023, 0.0
  %v1073 = vsel %vm1055, %v1024, 0.0
  %v1074 = vsel %vm1055, %v1025, 0.0
  %v1075 = vsel %vm1055, %v1026, 0.0
  %v1076 = vsel %vm1055, %v1027, 0.0
  %v1077 = vsel %vm1055, %v1028, 0.0
  %v1078 = vsel %vm1055, %v1029, 0.0
  %v1079 = vsel %vm1055, %v1030, 0.0
  %v1080 = vsel %vm1055, %v1031, 0.0
  %v1081 = vsel %vm1055, %v1032, 0.0
  %v1082 = vsel %vm1055, %v1033, 0.0
  %v1083 = vsel %vm1055, %v1034, 0.0
  %v1084 = vsel %vm1055, %v1035, 0.0
  %v1085 = vsel %vm1055, %v1036, 0.0
  %v1086 = vsel %vm1055, %v1037, 0.0
  %v1087 = vsel %vm1055, %v1038, 0.0
  %s1088 = scalar_lea.vmem [#allocation2], 16
  %1089 = vst.msk [vmem:[%s1088] sm:$0xff] %vm697, %v1056
  %vm1090 = vcmask 58368
  %1091 = vst.msk [vmem:[%s1088 + $0x8] sm:$0x3] %vm1090, %v1072
  %1092 = vst.msk [vmem:[%s1088 + $0x10] sm:$0xff] %vm697, %v1057
  %1093 = vst.msk [vmem:[%s1088 + $0x18] sm:$0x3] %vm1090, %v1073
  %1094 = vst.msk [vmem:[%s1088 + $0x20] sm:$0xff] %vm697, %v1058
  %1095 = vst.msk [vmem:[%s1088 + $0x28] sm:$0x3] %vm1090, %v1074
  %1096 = vst.msk [vmem:[%s1088 + $0x30] sm:$0xff] %vm697, %v1059
  %1097 = vst.msk [vmem:[%s1088 + $0x38] sm:$0x3] %vm1090, %v1075
  %1098 = vst.msk [vmem:[%s1088 + $0x40] sm:$0xff] %vm697, %v1060
  %1099 = vst.msk [vmem:[%s1088 + $0x48] sm:$0x3] %vm1090, %v1076
  %1100 = vst.msk [vmem:[%s1088 + $0x50] sm:$0xff] %vm697, %v1061
  %1101 = vst.msk [vmem:[%s1088 + $0x58] sm:$0x3] %vm1090, %v1077
  %1102 = vst.msk [vmem:[%s1088 + $0x60] sm:$0xff] %vm697, %v1062
  %1103 = vst.msk [vmem:[%s1088 + $0x68] sm:$0x3] %vm1090, %v1078
  %1104 = vst.msk [vmem:[%s1088 + $0x70] sm:$0xff] %vm697, %v1063
  %1105 = vst.msk [vmem:[%s1088 + $0x78] sm:$0x3] %vm1090, %v1079
  %1106 = vst.msk [vmem:[%s1088 + $0xa0] sm:$0xff] %vm697, %v1064
  %1107 = vst.msk [vmem:[%s1088 + $0xa8] sm:$0x3] %vm1090, %v1080
  %1108 = vst.msk [vmem:[%s1088 + $0xb0] sm:$0xff] %vm697, %v1065
  %1109 = vst.msk [vmem:[%s1088 + $0xb8] sm:$0x3] %vm1090, %v1081
  %1110 = vst.msk [vmem:[%s1088 + $0xc0] sm:$0xff] %vm697, %v1066
  %1111 = vst.msk [vmem:[%s1088 + $0xc8] sm:$0x3] %vm1090, %v1082
  %1112 = vst.msk [vmem:[%s1088 + $0xd0] sm:$0xff] %vm697, %v1067
  %1113 = vst.msk [vmem:[%s1088 + $0xd8] sm:$0x3] %vm1090, %v1083
  %1114 = vst.msk [vmem:[%s1088 + $0xe0] sm:$0xff] %vm697, %v1068
  %1115 = vst.msk [vmem:[%s1088 + $0xe8] sm:$0x3] %vm1090, %v1084
  %1116 = vst.msk [vmem:[%s1088 + $0xf0] sm:$0xff] %vm697, %v1069
  %1117 = vst.msk [vmem:[%s1088 + $0xf8] sm:$0x3] %vm1090, %v1085
  %1118 = vst.msk [vmem:[%s1088 + $0x100] sm:$0xff] %vm697, %v1070
  %1119 = vst.msk [vmem:[%s1088 + $0x108] sm:$0x3] %vm1090, %v1086
  %1120 = vst.msk [vmem:[%s1088 + $0x110] sm:$0xff] %vm697, %v1071
  %1121 = vst.msk [vmem:[%s1088 + $0x118] sm:$0x3] %vm1090, %v1087
  %1122 = vst.msk [vmem:[#allocation2] sm:$0xff] %vm697, 0.0
  %1123 = vst.msk [vmem:[#allocation2 + $0x8] sm:$0x3] %vm1090, 0.0
  %1124 = vst.msk [vmem:[#allocation2 + $0xa0] sm:$0xff] %vm697, 0.0
  %1125 = vst.msk [vmem:[#allocation2 + $0xa8] sm:$0x3] %vm1090, 0.0
  %s1126 = scalar_lea.vmem [#allocation2], 144
  %1127 = vst.msk [vmem:[%s1126] sm:$0xff] %vm697, 0.0
  %1128 = vst.msk [vmem:[%s1126 + $0x8] sm:$0x3] %vm1090, 0.0
  %1129 = vst.msk [vmem:[%s1126 + $0xa0] sm:$0xff] %vm697, 0.0
  %1130 = vst.msk [vmem:[%s1126 + $0xa8] sm:$0x3] %vm1090, 0.0
  %v1131 = vld [vmem:[#allocation2] sm:$0xff]
  %v1132 = vld [vmem:[#allocation2 + $0x10] sm:$0xff]
  %v1133 = vld [vmem:[#allocation2 + $0x20] sm:$0xff]
  %v1134 = vld [vmem:[#allocation2 + $0x30] sm:$0xff]
  %v1135 = vld [vmem:[#allocation2 + $0x40] sm:$0xff]
  %v1136 = vld [vmem:[#allocation2 + $0x50] sm:$0xff]
  %v1137 = vld [vmem:[#allocation2 + $0x60] sm:$0xff]
  %v1138 = vld [vmem:[#allocation2 + $0x70] sm:$0xff]
  %v1139 = vld [vmem:[#allocation2 + $0xa0] sm:$0xff]
  %v1140 = vld [vmem:[#allocation2 + $0xb0] sm:$0xff]
  %v1141 = vld [vmem:[#allocation2 + $0xc0] sm:$0xff]
  %v1142 = vld [vmem:[#allocation2 + $0xd0] sm:$0xff]
  %v1143 = vld [vmem:[#allocation2 + $0xe0] sm:$0xff]
  %v1144 = vld [vmem:[#allocation2 + $0xf0] sm:$0xff]
  %v1145 = vld [vmem:[#allocation2 + $0x100] sm:$0xff]
  %v1146 = vld [vmem:[#allocation2 + $0x110] sm:$0xff]
  %v1147 = vld [vmem:[#allocation2 + $0x1] sm:$0xff]
  %v1148 = vld [vmem:[#allocation2 + $0x11] sm:$0xff]
  %v1149 = vld [vmem:[#allocation2 + $0x21] sm:$0xff]
  %v1150 = vld [vmem:[#allocation2 + $0x31] sm:$0xff]
  %v1151 = vld [vmem:[#allocation2 + $0x41] sm:$0xff]
  %v1152 = vld [vmem:[#allocation2 + $0x51] sm:$0xff]
  %v1153 = vld [vmem:[#allocation2 + $0x61] sm:$0xff]
  %v1154 = vld [vmem:[#allocation2 + $0x71] sm:$0xff]
  %v1155 = vld [vmem:[#allocation2 + $0xa1] sm:$0xff]
  %v1156 = vld [vmem:[#allocation2 + $0xb1] sm:$0xff]
  %v1157 = vld [vmem:[#allocation2 + $0xc1] sm:$0xff]
  %v1158 = vld [vmem:[#allocation2 + $0xd1] sm:$0xff]
  %v1159 = vld [vmem:[#allocation2 + $0xe1] sm:$0xff]
  %v1160 = vld [vmem:[#allocation2 + $0xf1] sm:$0xff]
  %v1161 = vld [vmem:[#allocation2 + $0x101] sm:$0xff]
  %v1162 = vld [vmem:[#allocation2 + $0x111] sm:$0xff]
  %v1163 = vld [vmem:[#allocation2 + $0x2] sm:$0xff]
  %v1164 = vld [vmem:[#allocation2 + $0x12] sm:$0xff]
  %v1165 = vld [vmem:[#allocation2 + $0x22] sm:$0xff]
  %v1166 = vld [vmem:[#allocation2 + $0x32] sm:$0xff]
  %v1167 = vld [vmem:[#allocation2 + $0x42] sm:$0xff]
  %v1168 = vld [vmem:[#allocation2 + $0x52] sm:$0xff]
  %v1169 = vld [vmem:[#allocation2 + $0x62] sm:$0xff]
  %v1170 = vld [vmem:[#allocation2 + $0x72] sm:$0xff]
  %v1171 = vld [vmem:[#allocation2 + $0xa2] sm:$0xff]
  %v1172 = vld [vmem:[#allocation2 + $0xb2] sm:$0xff]
  %v1173 = vld [vmem:[#allocation2 + $0xc2] sm:$0xff]
  %v1174 = vld [vmem:[#allocation2 + $0xd2] sm:$0xff]
  %v1175 = vld [vmem:[#allocation2 + $0xe2] sm:$0xff]
  %v1176 = vld [vmem:[#allocation2 + $0xf2] sm:$0xff]
  %v1177 = vld [vmem:[#allocation2 + $0x102] sm:$0xff]
  %v1178 = vld [vmem:[#allocation2 + $0x112] sm:$0xff]
  %v1179 = vld [vmem:[%s1088] sm:$0xff]
  %v1180 = vld [vmem:[%s1088 + $0x10] sm:$0xff]
  %v1181 = vld [vmem:[%s1088 + $0x20] sm:$0xff]
  %v1182 = vld [vmem:[%s1088 + $0x30] sm:$0xff]
  %v1183 = vld [vmem:[%s1088 + $0x40] sm:$0xff]
  %v1184 = vld [vmem:[%s1088 + $0x50] sm:$0xff]
  %v1185 = vld [vmem:[%s1088 + $0x60] sm:$0xff]
  %v1186 = vld [vmem:[%s1088 + $0x70] sm:$0xff]
  %v1187 = vld [vmem:[%s1088 + $0xa0] sm:$0xff]
  %v1188 = vld [vmem:[%s1088 + $0xb0] sm:$0xff]
  %v1189 = vld [vmem:[%s1088 + $0xc0] sm:$0xff]
  %v1190 = vld [vmem:[%s1088 + $0xd0] sm:$0xff]
  %v1191 = vld [vmem:[%s1088 + $0xe0] sm:$0xff]
  %v1192 = vld [vmem:[%s1088 + $0xf0] sm:$0xff]
  %v1193 = vld [vmem:[%s1088 + $0x100] sm:$0xff]
  %v1194 = vld [vmem:[%s1088 + $0x110] sm:$0xff]
  %v1195 = vld [vmem:[%s1088 + $0x1] sm:$0xff]
  %v1196 = vld [vmem:[%s1088 + $0x11] sm:$0xff]
  %v1197 = vld [vmem:[%s1088 + $0x21] sm:$0xff]
  %v1198 = vld [vmem:[%s1088 + $0x31] sm:$0xff]
  %v1199 = vld [vmem:[%s1088 + $0x41] sm:$0xff]
  %v1200 = vld [vmem:[%s1088 + $0x51] sm:$0xff]
  %v1201 = vld [vmem:[%s1088 + $0x61] sm:$0xff]
  %v1202 = vld [vmem:[%s1088 + $0x71] sm:$0xff]
  %v1203 = vld [vmem:[%s1088 + $0xa1] sm:$0xff]
  %v1204 = vld [vmem:[%s1088 + $0xb1] sm:$0xff]
  %v1205 = vld [vmem:[%s1088 + $0xc1] sm:$0xff]
  %v1206 = vld [vmem:[%s1088 + $0xd1] sm:$0xff]
  %v1207 = vld [vmem:[%s1088 + $0xe1] sm:$0xff]
  %v1208 = vld [vmem:[%s1088 + $0xf1] sm:$0xff]
  %v1209 = vld [vmem:[%s1088 + $0x101] sm:$0xff]
  %v1210 = vld [vmem:[%s1088 + $0x111] sm:$0xff]
  %v1211 = vld [vmem:[%s1088 + $0x2] sm:$0xff]
  %v1212 = vld [vmem:[%s1088 + $0x12] sm:$0xff]
  %v1213 = vld [vmem:[%s1088 + $0x22] sm:$0xff]
  %v1214 = vld [vmem:[%s1088 + $0x32] sm:$0xff]
  %v1215 = vld [vmem:[%s1088 + $0x42] sm:$0xff]
  %v1216 = vld [vmem:[%s1088 + $0x52] sm:$0xff]
  %v1217 = vld [vmem:[%s1088 + $0x62] sm:$0xff]
  %v1218 = vld [vmem:[%s1088 + $0x72] sm:$0xff]
  %v1219 = vld [vmem:[%s1088 + $0xa2] sm:$0xff]
  %v1220 = vld [vmem:[%s1088 + $0xb2] sm:$0xff]
  %v1221 = vld [vmem:[%s1088 + $0xc2] sm:$0xff]
  %v1222 = vld [vmem:[%s1088 + $0xd2] sm:$0xff]
  %v1223 = vld [vmem:[%s1088 + $0xe2] sm:$0xff]
  %v1224 = vld [vmem:[%s1088 + $0xf2] sm:$0xff]
  %v1225 = vld [vmem:[%s1088 + $0x102] sm:$0xff]
  %v1226 = vld [vmem:[%s1088 + $0x112] sm:$0xff]
  %s1227 = scalar_lea.vmem [#allocation2], 32
  %v1228 = vld [vmem:[%s1227] sm:$0xff]
  %v1229 = vld [vmem:[%s1227 + $0x10] sm:$0xff]
  %v1230 = vld [vmem:[%s1227 + $0x20] sm:$0xff]
  %v1231 = vld [vmem:[%s1227 + $0x30] sm:$0xff]
  %v1232 = vld [vmem:[%s1227 + $0x40] sm:$0xff]
  %v1233 = vld [vmem:[%s1227 + $0x50] sm:$0xff]
  %v1234 = vld [vmem:[%s1227 + $0x60] sm:$0xff]
  %v1235 = vld [vmem:[%s1227 + $0x70] sm:$0xff]
  %v1236 = vld [vmem:[%s1227 + $0xa0] sm:$0xff]
  %v1237 = vld [vmem:[%s1227 + $0xb0] sm:$0xff]
  %v1238 = vld [vmem:[%s1227 + $0xc0] sm:$0xff]
  %v1239 = vld [vmem:[%s1227 + $0xd0] sm:$0xff]
  %v1240 = vld [vmem:[%s1227 + $0xe0] sm:$0xff]
  %v1241 = vld [vmem:[%s1227 + $0xf0] sm:$0xff]
  %v1242 = vld [vmem:[%s1227 + $0x100] sm:$0xff]
  %v1243 = vld [vmem:[%s1227 + $0x110] sm:$0xff]
  %v1244 = vld [vmem:[%s1227 + $0x1] sm:$0xff]
  %v1245 = vld [vmem:[%s1227 + $0x11] sm:$0xff]
  %v1246 = vld [vmem:[%s1227 + $0x21] sm:$0xff]
  %v1247 = vld [vmem:[%s1227 + $0x31] sm:$0xff]
  %v1248 = vld [vmem:[%s1227 + $0x41] sm:$0xff]
  %v1249 = vld [vmem:[%s1227 + $0x51] sm:$0xff]
  %v1250 = vld [vmem:[%s1227 + $0x61] sm:$0xff]
  %v1251 = vld [vmem:[%s1227 + $0x71] sm:$0xff]
  %v1252 = vld [vmem:[%s1227 + $0xa1] sm:$0xff]
  %v1253 = vld [vmem:[%s1227 + $0xb1] sm:$0xff]
  %v1254 = vld [vmem:[%s1227 + $0xc1] sm:$0xff]
  %v1255 = vld [vmem:[%s1227 + $0xd1] sm:$0xff]
  %v1256 = vld [vmem:[%s1227 + $0xe1] sm:$0xff]
  %v1257 = vld [vmem:[%s1227 + $0xf1] sm:$0xff]
  %v1258 = vld [vmem:[%s1227 + $0x101] sm:$0xff]
  %v1259 = vld [vmem:[%s1227 + $0x111] sm:$0xff]
  %v1260 = vld [vmem:[%s1227 + $0x2] sm:$0xff]
  %v1261 = vld [vmem:[%s1227 + $0x12] sm:$0xff]
  %v1262 = vld [vmem:[%s1227 + $0x22] sm:$0xff]
  %v1263 = vld [vmem:[%s1227 + $0x32] sm:$0xff]
  %v1264 = vld [vmem:[%s1227 + $0x42] sm:$0xff]
  %v1265 = vld [vmem:[%s1227 + $0x52] sm:$0xff]
  %v1266 = vld [vmem:[%s1227 + $0x62] sm:$0xff]
  %v1267 = vld [vmem:[%s1227 + $0x72] sm:$0xff]
  %v1268 = vld [vmem:[%s1227 + $0xa2] sm:$0xff]
  %v1269 = vld [vmem:[%s1227 + $0xb2] sm:$0xff]
  %v1270 = vld [vmem:[%s1227 + $0xc2] sm:$0xff]
  %v1271 = vld [vmem:[%s1227 + $0xd2] sm:$0xff]
  %v1272 = vld [vmem:[%s1227 + $0xe2] sm:$0xff]
  %v1273 = vld [vmem:[%s1227 + $0xf2] sm:$0xff]
  %v1274 = vld [vmem:[%s1227 + $0x102] sm:$0xff]
  %v1275 = vld [vmem:[%s1227 + $0x112] sm:$0xff]
  %1292 = vrot.lane.b32.xlu0 %v1147, 8
  %v1293 = vpop.permute.xlu0 %1292
  %1294 = vrot.lane.b32.xlu0 %v1148, 8
  %v1295 = vpop.permute.xlu0 %1294
  %1296 = vrot.lane.b32.xlu0 %v1149, 8
  %v1297 = vpop.permute.xlu0 %1296
  %1298 = vrot.lane.b32.xlu0 %v1150, 8
  %v1299 = vpop.permute.xlu0 %1298
  %1300 = vrot.lane.b32.xlu0 %v1151, 8
  %v1301 = vpop.permute.xlu0 %1300
  %1302 = vrot.lane.b32.xlu0 %v1152, 8
  %v1303 = vpop.permute.xlu0 %1302
  %1304 = vrot.lane.b32.xlu0 %v1153, 8
  %v1305 = vpop.permute.xlu0 %1304
  %1306 = vrot.lane.b32.xlu0 %v1154, 8
  %v1307 = vpop.permute.xlu0 %1306
  %1308 = vrot.lane.b32.xlu0 %v1155, 8
  %v1309 = vpop.permute.xlu0 %1308
  %1310 = vrot.lane.b32.xlu0 %v1156, 8
  %v1311 = vpop.permute.xlu0 %1310
  %1312 = vrot.lane.b32.xlu0 %v1157, 8
  %v1313 = vpop.permute.xlu0 %1312
  %1314 = vrot.lane.b32.xlu0 %v1158, 8
  %v1315 = vpop.permute.xlu0 %1314
  %1316 = vrot.lane.b32.xlu0 %v1159, 8
  %v1317 = vpop.permute.xlu0 %1316
  %1318 = vrot.lane.b32.xlu0 %v1160, 8
  %v1319 = vpop.permute.xlu0 %1318
  %1320 = vrot.lane.b32.xlu0 %v1161, 8
  %v1321 = vpop.permute.xlu0 %1320
  %1322 = vrot.lane.b32.xlu0 %v1162, 8
  %v1323 = vpop.permute.xlu0 %1322
  %1356 = vrot.lane.b32.xlu0 %v1163, 16
  %v1357 = vpop.permute.xlu0 %1356
  %1358 = vrot.lane.b32.xlu0 %v1164, 16
  %v1359 = vpop.permute.xlu0 %1358
  %1360 = vrot.lane.b32.xlu0 %v1165, 16
  %v1361 = vpop.permute.xlu0 %1360
  %1362 = vrot.lane.b32.xlu0 %v1166, 16
  %v1363 = vpop.permute.xlu0 %1362
  %1364 = vrot.lane.b32.xlu0 %v1167, 16
  %v1365 = vpop.permute.xlu0 %1364
  %1366 = vrot.lane.b32.xlu0 %v1168, 16
  %v1367 = vpop.permute.xlu0 %1366
  %1368 = vrot.lane.b32.xlu0 %v1169, 16
  %v1369 = vpop.permute.xlu0 %1368
  %1370 = vrot.lane.b32.xlu0 %v1170, 16
  %v1371 = vpop.permute.xlu0 %1370
  %1372 = vrot.lane.b32.xlu0 %v1171, 16
  %v1373 = vpop.permute.xlu0 %1372
  %1374 = vrot.lane.b32.xlu0 %v1172, 16
  %v1375 = vpop.permute.xlu0 %1374
  %1376 = vrot.lane.b32.xlu0 %v1173, 16
  %v1377 = vpop.permute.xlu0 %1376
  %1378 = vrot.lane.b32.xlu0 %v1174, 16
  %v1379 = vpop.permute.xlu0 %1378
  %1380 = vrot.lane.b32.xlu0 %v1175, 16
  %v1381 = vpop.permute.xlu0 %1380
  %1382 = vrot.lane.b32.xlu0 %v1176, 16
  %v1383 = vpop.permute.xlu0 %1382
  %1384 = vrot.lane.b32.xlu0 %v1177, 16
  %v1385 = vpop.permute.xlu0 %1384
  %1386 = vrot.lane.b32.xlu0 %v1178, 16
  %v1387 = vpop.permute.xlu0 %1386
  %1420 = vrot.lane.b32.xlu0 %v1179, 24
  %v1421 = vpop.permute.xlu0 %1420
  %1422 = vrot.lane.b32.xlu0 %v1180, 24
  %v1423 = vpop.permute.xlu0 %1422
  %1424 = vrot.lane.b32.xlu0 %v1181, 24
  %v1425 = vpop.permute.xlu0 %1424
  %1426 = vrot.lane.b32.xlu0 %v1182, 24
  %v1427 = vpop.permute.xlu0 %1426
  %1428 = vrot.lane.b32.xlu0 %v1183, 24
  %v1429 = vpop.permute.xlu0 %1428
  %1430 = vrot.lane.b32.xlu0 %v1184, 24
  %v1431 = vpop.permute.xlu0 %1430
  %1432 = vrot.lane.b32.xlu0 %v1185, 24
  %v1433 = vpop.permute.xlu0 %1432
  %1434 = vrot.lane.b32.xlu0 %v1186, 24
  %v1435 = vpop.permute.xlu0 %1434
  %1436 = vrot.lane.b32.xlu0 %v1187, 24
  %v1437 = vpop.permute.xlu0 %1436
  %1438 = vrot.lane.b32.xlu0 %v1188, 24
  %v1439 = vpop.permute.xlu0 %1438
  %1440 = vrot.lane.b32.xlu0 %v1189, 24
  %v1441 = vpop.permute.xlu0 %1440
  %1442 = vrot.lane.b32.xlu0 %v1190, 24
  %v1443 = vpop.permute.xlu0 %1442
  %1444 = vrot.lane.b32.xlu0 %v1191, 24
  %v1445 = vpop.permute.xlu0 %1444
  %1446 = vrot.lane.b32.xlu0 %v1192, 24
  %v1447 = vpop.permute.xlu0 %1446
  %1448 = vrot.lane.b32.xlu0 %v1193, 24
  %v1449 = vpop.permute.xlu0 %1448
  %1450 = vrot.lane.b32.xlu0 %v1194, 24
  %v1451 = vpop.permute.xlu0 %1450
  %1484 = vrot.lane.b32.xlu0 %v1195, 32
  %v1485 = vpop.permute.xlu0 %1484
  %1486 = vrot.lane.b32.xlu0 %v1196, 32
  %v1487 = vpop.permute.xlu0 %1486
  %1488 = vrot.lane.b32.xlu0 %v1197, 32
  %v1489 = vpop.permute.xlu0 %1488
  %1490 = vrot.lane.b32.xlu0 %v1198, 32
  %v1491 = vpop.permute.xlu0 %1490
  %1492 = vrot.lane.b32.xlu0 %v1199, 32
  %v1493 = vpop.permute.xlu0 %1492
  %1494 = vrot.lane.b32.xlu0 %v1200, 32
  %v1495 = vpop.permute.xlu0 %1494
  %1496 = vrot.lane.b32.xlu0 %v1201, 32
  %v1497 = vpop.permute.xlu0 %1496
  %1498 = vrot.lane.b32.xlu0 %v1202, 32
  %v1499 = vpop.permute.xlu0 %1498
  %1500 = vrot.lane.b32.xlu0 %v1203, 32
  %v1501 = vpop.permute.xlu0 %1500
  %1502 = vrot.lane.b32.xlu0 %v1204, 32
  %v1503 = vpop.permute.xlu0 %1502
  %1504 = vrot.lane.b32.xlu0 %v1205, 32
  %v1505 = vpop.permute.xlu0 %1504
  %1506 = vrot.lane.b32.xlu0 %v1206, 32
  %v1507 = vpop.permute.xlu0 %1506
  %1508 = vrot.lane.b32.xlu0 %v1207, 32
  %v1509 = vpop.permute.xlu0 %1508
  %1510 = vrot.lane.b32.xlu0 %v1208, 32
  %v1511 = vpop.permute.xlu0 %1510
  %1512 = vrot.lane.b32.xlu0 %v1209, 32
  %v1513 = vpop.permute.xlu0 %1512
  %1514 = vrot.lane.b32.xlu0 %v1210, 32
  %v1515 = vpop.permute.xlu0 %1514
  %1548 = vrot.lane.b32.xlu0 %v1211, 40
  %v1549 = vpop.permute.xlu0 %1548
  %1550 = vrot.lane.b32.xlu0 %v1212, 40
  %v1551 = vpop.permute.xlu0 %1550
  %1552 = vrot.lane.b32.xlu0 %v1213, 40
  %v1553 = vpop.permute.xlu0 %1552
  %1554 = vrot.lane.b32.xlu0 %v1214, 40
  %v1555 = vpop.permute.xlu0 %1554
  %1556 = vrot.lane.b32.xlu0 %v1215, 40
  %v1557 = vpop.permute.xlu0 %1556
  %1558 = vrot.lane.b32.xlu0 %v1216, 40
  %v1559 = vpop.permute.xlu0 %1558
  %1560 = vrot.lane.b32.xlu0 %v1217, 40
  %v1561 = vpop.permute.xlu0 %1560
  %1562 = vrot.lane.b32.xlu0 %v1218, 40
  %v1563 = vpop.permute.xlu0 %1562
  %1564 = vrot.lane.b32.xlu0 %v1219, 40
  %v1565 = vpop.permute.xlu0 %1564
  %1566 = vrot.lane.b32.xlu0 %v1220, 40
  %v1567 = vpop.permute.xlu0 %1566
  %1568 = vrot.lane.b32.xlu0 %v1221, 40
  %v1569 = vpop.permute.xlu0 %1568
  %1570 = vrot.lane.b32.xlu0 %v1222, 40
  %v1571 = vpop.permute.xlu0 %1570
  %1572 = vrot.lane.b32.xlu0 %v1223, 40
  %v1573 = vpop.permute.xlu0 %1572
  %1574 = vrot.lane.b32.xlu0 %v1224, 40
  %v1575 = vpop.permute.xlu0 %1574
  %1576 = vrot.lane.b32.xlu0 %v1225, 40
  %v1577 = vpop.permute.xlu0 %1576
  %1578 = vrot.lane.b32.xlu0 %v1226, 40
  %v1579 = vpop.permute.xlu0 %1578
  %1612 = vrot.lane.b32.xlu0 %v1228, 48
  %v1613 = vpop.permute.xlu0 %1612
  %1614 = vrot.lane.b32.xlu0 %v1229, 48
  %v1615 = vpop.permute.xlu0 %1614
  %1616 = vrot.lane.b32.xlu0 %v1230, 48
  %v1617 = vpop.permute.xlu0 %1616
  %1618 = vrot.lane.b32.xlu0 %v1231, 48
  %v1619 = vpop.permute.xlu0 %1618
  %1620 = vrot.lane.b32.xlu0 %v1232, 48
  %v1621 = vpop.permute.xlu0 %1620
  %1622 = vrot.lane.b32.xlu0 %v1233, 48
  %v1623 = vpop.permute.xlu0 %1622
  %1624 = vrot.lane.b32.xlu0 %v1234, 48
  %v1625 = vpop.permute.xlu0 %1624
  %1626 = vrot.lane.b32.xlu0 %v1235, 48
  %v1627 = vpop.permute.xlu0 %1626
  %1628 = vrot.lane.b32.xlu0 %v1236, 48
  %v1629 = vpop.permute.xlu0 %1628
  %1630 = vrot.lane.b32.xlu0 %v1237, 48
  %v1631 = vpop.permute.xlu0 %1630
  %1632 = vrot.lane.b32.xlu0 %v1238, 48
  %v1633 = vpop.permute.xlu0 %1632
  %1634 = vrot.lane.b32.xlu0 %v1239, 48
  %v1635 = vpop.permute.xlu0 %1634
  %1636 = vrot.lane.b32.xlu0 %v1240, 48
  %v1637 = vpop.permute.xlu0 %1636
  %1638 = vrot.lane.b32.xlu0 %v1241, 48
  %v1639 = vpop.permute.xlu0 %1638
  %1640 = vrot.lane.b32.xlu0 %v1242, 48
  %v1641 = vpop.permute.xlu0 %1640
  %1642 = vrot.lane.b32.xlu0 %v1243, 48
  %v1643 = vpop.permute.xlu0 %1642
  %1676 = vrot.lane.b32.xlu0 %v1244, 56
  %v1677 = vpop.permute.xlu0 %1676
  %1678 = vrot.lane.b32.xlu0 %v1245, 56
  %v1679 = vpop.permute.xlu0 %1678
  %1680 = vrot.lane.b32.xlu0 %v1246, 56
  %v1681 = vpop.permute.xlu0 %1680
  %1682 = vrot.lane.b32.xlu0 %v1247, 56
  %v1683 = vpop.permute.xlu0 %1682
  %1684 = vrot.lane.b32.xlu0 %v1248, 56
  %v1685 = vpop.permute.xlu0 %1684
  %1686 = vrot.lane.b32.xlu0 %v1249, 56
  %v1687 = vpop.permute.xlu0 %1686
  %1688 = vrot.lane.b32.xlu0 %v1250, 56
  %v1689 = vpop.permute.xlu0 %1688
  %1690 = vrot.lane.b32.xlu0 %v1251, 56
  %v1691 = vpop.permute.xlu0 %1690
  %1692 = vrot.lane.b32.xlu0 %v1252, 56
  %v1693 = vpop.permute.xlu0 %1692
  %1694 = vrot.lane.b32.xlu0 %v1253, 56
  %v1695 = vpop.permute.xlu0 %1694
  %1696 = vrot.lane.b32.xlu0 %v1254, 56
  %v1697 = vpop.permute.xlu0 %1696
  %1698 = vrot.lane.b32.xlu0 %v1255, 56
  %v1699 = vpop.permute.xlu0 %1698
  %1700 = vrot.lane.b32.xlu0 %v1256, 56
  %v1701 = vpop.permute.xlu0 %1700
  %1702 = vrot.lane.b32.xlu0 %v1257, 56
  %v1703 = vpop.permute.xlu0 %1702
  %1704 = vrot.lane.b32.xlu0 %v1258, 56
  %v1705 = vpop.permute.xlu0 %1704
  %1706 = vrot.lane.b32.xlu0 %v1259, 56
  %v1707 = vpop.permute.xlu0 %1706
  %1740 = vrot.lane.b32.xlu0 %v1260, 64
  %v1741 = vpop.permute.xlu0 %1740
  %1742 = vrot.lane.b32.xlu0 %v1261, 64
  %v1743 = vpop.permute.xlu0 %1742
  %1744 = vrot.lane.b32.xlu0 %v1262, 64
  %v1745 = vpop.permute.xlu0 %1744
  %1746 = vrot.lane.b32.xlu0 %v1263, 64
  %v1747 = vpop.permute.xlu0 %1746
  %1748 = vrot.lane.b32.xlu0 %v1264, 64
  %v1749 = vpop.permute.xlu0 %1748
  %1750 = vrot.lane.b32.xlu0 %v1265, 64
  %v1751 = vpop.permute.xlu0 %1750
  %1752 = vrot.lane.b32.xlu0 %v1266, 64
  %v1753 = vpop.permute.xlu0 %1752
  %1754 = vrot.lane.b32.xlu0 %v1267, 64
  %v1755 = vpop.permute.xlu0 %1754
  %1756 = vrot.lane.b32.xlu0 %v1268, 64
  %v1757 = vpop.permute.xlu0 %1756
  %1758 = vrot.lane.b32.xlu0 %v1269, 64
  %v1759 = vpop.permute.xlu0 %1758
  %1760 = vrot.lane.b32.xlu0 %v1270, 64
  %v1761 = vpop.permute.xlu0 %1760
  %1762 = vrot.lane.b32.xlu0 %v1271, 64
  %v1763 = vpop.permute.xlu0 %1762
  %1764 = vrot.lane.b32.xlu0 %v1272, 64
  %v1765 = vpop.permute.xlu0 %1764
  %1766 = vrot.lane.b32.xlu0 %v1273, 64
  %v1767 = vpop.permute.xlu0 %1766
  %1768 = vrot.lane.b32.xlu0 %v1274, 64
  %v1769 = vpop.permute.xlu0 %1768
  %1770 = vrot.lane.b32.xlu0 %v1275, 64
  %v1771 = vpop.permute.xlu0 %1770
  %v1788 = vsel %vm697, %v1131, %v1293
  %v1789 = vsel %vm697, %v1132, %v1295
  %v1790 = vsel %vm697, %v1133, %v1297
  %v1791 = vsel %vm697, %v1134, %v1299
  %v1792 = vsel %vm697, %v1135, %v1301
  %v1793 = vsel %vm697, %v1136, %v1303
  %v1794 = vsel %vm697, %v1137, %v1305
  %v1795 = vsel %vm697, %v1138, %v1307
  %v1796 = vsel %vm697, %v1139, %v1309
  %v1797 = vsel %vm697, %v1140, %v1311
  %v1798 = vsel %vm697, %v1141, %v1313
  %v1799 = vsel %vm697, %v1142, %v1315
  %v1800 = vsel %vm697, %v1143, %v1317
  %v1801 = vsel %vm697, %v1144, %v1319
  %v1802 = vsel %vm697, %v1145, %v1321
  %v1803 = vsel %vm697, %v1146, %v1323
  %v1804 = vsel %vm731, %v1788, %v1357
  %v1805 = vsel %vm731, %v1789, %v1359
  %v1806 = vsel %vm731, %v1790, %v1361
  %v1807 = vsel %vm731, %v1791, %v1363
  %v1808 = vsel %vm731, %v1792, %v1365
  %v1809 = vsel %vm731, %v1793, %v1367
  %v1810 = vsel %vm731, %v1794, %v1369
  %v1811 = vsel %vm731, %v1795, %v1371
  %v1812 = vsel %vm731, %v1796, %v1373
  %v1813 = vsel %vm731, %v1797, %v1375
  %v1814 = vsel %vm731, %v1798, %v1377
  %v1815 = vsel %vm731, %v1799, %v1379
  %v1816 = vsel %vm731, %v1800, %v1381
  %v1817 = vsel %vm731, %v1801, %v1383
  %v1818 = vsel %vm731, %v1802, %v1385
  %v1819 = vsel %vm731, %v1803, %v1387
  %v1820 = vsel %vm765, %v1804, %v1421
  %v1821 = vsel %vm765, %v1805, %v1423
  %v1822 = vsel %vm765, %v1806, %v1425
  %v1823 = vsel %vm765, %v1807, %v1427
  %v1824 = vsel %vm765, %v1808, %v1429
  %v1825 = vsel %vm765, %v1809, %v1431
  %v1826 = vsel %vm765, %v1810, %v1433
  %v1827 = vsel %vm765, %v1811, %v1435
  %v1828 = vsel %vm765, %v1812, %v1437
  %v1829 = vsel %vm765, %v1813, %v1439
  %v1830 = vsel %vm765, %v1814, %v1441
  %v1831 = vsel %vm765, %v1815, %v1443
  %v1832 = vsel %vm765, %v1816, %v1445
  %v1833 = vsel %vm765, %v1817, %v1447
  %v1834 = vsel %vm765, %v1818, %v1449
  %v1835 = vsel %vm765, %v1819, %v1451
  %v1836 = vsel %vm799, %v1820, %v1485
  %v1837 = vsel %vm799, %v1821, %v1487
  %v1838 = vsel %vm799, %v1822, %v1489
  %v1839 = vsel %vm799, %v1823, %v1491
  %v1840 = vsel %vm799, %v1824, %v1493
  %v1841 = vsel %vm799, %v1825, %v1495
  %v1842 = vsel %vm799, %v1826, %v1497
  %v1843 = vsel %vm799, %v1827, %v1499
  %v1844 = vsel %vm799, %v1828, %v1501
  %v1845 = vsel %vm799, %v1829, %v1503
  %v1846 = vsel %vm799, %v1830, %v1505
  %v1847 = vsel %vm799, %v1831, %v1507
  %v1848 = vsel %vm799, %v1832, %v1509
  %v1849 = vsel %vm799, %v1833, %v1511
  %v1850 = vsel %vm799, %v1834, %v1513
  %v1851 = vsel %vm799, %v1835, %v1515
  %vm1852 = vcmask 326656
  %v1853 = vsel %vm1852, %v1836, %v1549
  %v1854 = vsel %vm1852, %v1837, %v1551
  %v1855 = vsel %vm1852, %v1838, %v1553
  %v1856 = vsel %vm1852, %v1839, %v1555
  %v1857 = vsel %vm1852, %v1840, %v1557
  %v1858 = vsel %vm1852, %v1841, %v1559
  %v1859 = vsel %vm1852, %v1842, %v1561
  %v1860 = vsel %vm1852, %v1843, %v1563
  %v1861 = vsel %vm1852, %v1844, %v1565
  %v1862 = vsel %vm1852, %v1845, %v1567
  %v1863 = vsel %vm1852, %v1846, %v1569
  %v1864 = vsel %vm1852, %v1847, %v1571
  %v1865 = vsel %vm1852, %v1848, %v1573
  %v1866 = vsel %vm1852, %v1849, %v1575
  %v1867 = vsel %vm1852, %v1850, %v1577
  %v1868 = vsel %vm1852, %v1851, %v1579
  %vm1869 = vcmask 392192
  %v1870 = vsel %vm1869, %v1853, %v1613
  %v1871 = vsel %vm1869, %v1854, %v1615
  %v1872 = vsel %vm1869, %v1855, %v1617
  %v1873 = vsel %vm1869, %v1856, %v1619
  %v1874 = vsel %vm1869, %v1857, %v1621
  %v1875 = vsel %vm1869, %v1858, %v1623
  %v1876 = vsel %vm1869, %v1859, %v1625
  %v1877 = vsel %vm1869, %v1860, %v1627
  %v1878 = vsel %vm1869, %v1861, %v1629
  %v1879 = vsel %vm1869, %v1862, %v1631
  %v1880 = vsel %vm1869, %v1863, %v1633
  %v1881 = vsel %vm1869, %v1864, %v1635
  %v1882 = vsel %vm1869, %v1865, %v1637
  %v1883 = vsel %vm1869, %v1866, %v1639
  %v1884 = vsel %vm1869, %v1867, %v1641
  %v1885 = vsel %vm1869, %v1868, %v1643
  %vm1886 = vcmask 457728
  %v1887 = vsel %vm1886, %v1870, %v1677
  %v1888 = vsel %vm1886, %v1871, %v1679
  %v1889 = vsel %vm1886, %v1872, %v1681
  %v1890 = vsel %vm1886, %v1873, %v1683
  %v1891 = vsel %vm1886, %v1874, %v1685
  %v1892 = vsel %vm1886, %v1875, %v1687
  %v1893 = vsel %vm1886, %v1876, %v1689
  %v1894 = vsel %vm1886, %v1877, %v1691
  %v1895 = vsel %vm1886, %v1878, %v1693
  %v1896 = vsel %vm1886, %v1879, %v1695
  %v1897 = vsel %vm1886, %v1880, %v1697
  %v1898 = vsel %vm1886, %v1881, %v1699
  %v1899 = vsel %vm1886, %v1882, %v1701
  %v1900 = vsel %vm1886, %v1883, %v1703
  %v1901 = vsel %vm1886, %v1884, %v1705
  %v1902 = vsel %vm1886, %v1885, %v1707
  %vm1903 = vcmask 523264
  %v1904 = vsel %vm1903, %v1887, %v1741
  %v1905 = vsel %vm1903, %v1888, %v1743
  %v1906 = vsel %vm1903, %v1889, %v1745
  %v1907 = vsel %vm1903, %v1890, %v1747
  %v1908 = vsel %vm1903, %v1891, %v1749
  %v1909 = vsel %vm1903, %v1892, %v1751
  %v1910 = vsel %vm1903, %v1893, %v1753
  %v1911 = vsel %vm1903, %v1894, %v1755
  %v1912 = vsel %vm1903, %v1895, %v1757
  %v1913 = vsel %vm1903, %v1896, %v1759
  %v1914 = vsel %vm1903, %v1897, %v1761
  %v1915 = vsel %vm1903, %v1898, %v1763
  %v1916 = vsel %vm1903, %v1899, %v1765
  %v1917 = vsel %vm1903, %v1900, %v1767
  %v1918 = vsel %vm1903, %v1901, %v1769
  %v1919 = vsel %vm1903, %v1902, %v1771
  %v1920 = vpack.c.bf16 %v1905, %v1904
  %v1921 = vpack.c.bf16 %v1907, %v1906
  %v1922 = vpack.c.bf16 %v1909, %v1908
  %v1923 = vpack.c.bf16 %v1911, %v1910
  %v1924 = vpack.c.bf16 %v1913, %v1912
  %v1925 = vpack.c.bf16 %v1915, %v1914
  %v1926 = vpack.c.bf16 %v1917, %v1916
  %v1927 = vpack.c.bf16 %v1919, %v1918
  %v1928 = vld [vmem:[%s2] sm:$0xf]
  %v1929 = vld [vmem:[%s2 + $0x4] sm:$0xf]
  %v1930 = vld [vmem:[%s2 + $0x8] sm:$0xf]
  %v1931 = vld [vmem:[%s2 + $0xc] sm:$0xf]
  %v1932 = vld [vmem:[%s2 + $0x10] sm:$0xf]
  %v1933 = vld [vmem:[%s2 + $0x14] sm:$0xf]
  %v1934 = vld [vmem:[%s2 + $0x18] sm:$0xf]
  %v1935 = vld [vmem:[%s2 + $0x1c] sm:$0xf]
  %v1936 = vld [vmem:[%s2 + $0x20] sm:$0xf]
  %v1946 = vunpack.c.l.b16 %v1928
  %v1947 = vunpack.c.l.b16 %v1929
  %v1948 = vunpack.c.l.b16 %v1930
  %v1949 = vunpack.c.l.b16 %v1931
  %v1950 = vunpack.c.l.b16 %v1932
  %v1951 = vunpack.c.l.b16 %v1933
  %v1952 = vunpack.c.l.b16 %v1934
  %v1953 = vunpack.c.l.b16 %v1935
  %v1954 = vunpack.c.l.b16 %v1936
  %v1955 = vpack.c.b16 %v1947, %v1946
  %v1956 = vpack.c.b16 %v1949, %v1948
  %v1957 = vpack.c.b16 %v1951, %v1950
  %v1958 = vpack.c.b16 %v1953, %v1952
  %v1959 = vpack.c.b16 %v1954, %v1954
  %1980 = vrot.lane.b32.xlu0 %v908, 120
  %v1981 = vpop.permute.xlu0 %1980
  %1982 = vrot.lane.b32.xlu0 %v911, 120
  %v1983 = vpop.permute.xlu0 %1982
  %1984 = vrot.lane.b32.xlu0 %v916, 120
  %v1985 = vpop.permute.xlu0 %1984
  %1986 = vrot.lane.b32.xlu0 %v919, 120
  %v1987 = vpop.permute.xlu0 %1986
  %1988 = vrot.lane.b32.xlu0 %v924, 120
  %v1989 = vpop.permute.xlu0 %1988
  %1990 = vrot.lane.b32.xlu0 %v927, 120
  %v1991 = vpop.permute.xlu0 %1990
  %1992 = vrot.lane.b32.xlu0 %v932, 120
  %v1993 = vpop.permute.xlu0 %1992
  %1994 = vrot.lane.b32.xlu0 %v935, 120
  %v1995 = vpop.permute.xlu0 %1994
  %1996 = vrot.lane.b32.xlu0 %v940, 120
  %v1997 = vpop.permute.xlu0 %1996
  %1998 = vrot.lane.b32.xlu0 %v943, 120
  %v1999 = vpop.permute.xlu0 %1998
  %2000 = vrot.lane.b32.xlu0 %v948, 120
  %v2001 = vpop.permute.xlu0 %2000
  %2002 = vrot.lane.b32.xlu0 %v951, 120
  %v2003 = vpop.permute.xlu0 %2002
  %2004 = vrot.lane.b32.xlu0 %v956, 120
  %v2005 = vpop.permute.xlu0 %2004
  %2006 = vrot.lane.b32.xlu0 %v959, 120
  %v2007 = vpop.permute.xlu0 %2006
  %2008 = vrot.lane.b32.xlu0 %v964, 120
  %v2009 = vpop.permute.xlu0 %2008
  %2010 = vrot.lane.b32.xlu0 %v967, 120
  %v2011 = vpop.permute.xlu0 %2010
  %vm2028 = vcmask 588800
  %v2030 = vsel %vm2028, %v1920, 0
  %v2033 = vsel %vm2028, %v1921, 0
  %v2036 = vsel %vm2028, %v1922, 0
  %v2039 = vsel %vm2028, %v1923, 0
  %v2042 = vsel %vm2028, %v1924, 0
  %v2045 = vsel %vm2028, %v1925, 0
  %v2048 = vsel %vm2028, %v1926, 0
  %v2051 = vsel %vm2028, %v1927, 0
  %vm2053 = vcmask 1043456
  %v2055 = vsel %vm2053, %v1959, 0
  %2057 = vmatprep.subr.bf16.mxu0 0
  %2058 = vmatpush1.bf16.msra.mxu0 %v1955
  %2059 = vmatprep.subr.bf16.mxu0 0
  %2060 = vmatpush1.bf16.msra.mxu0 %v1956
  %2061 = vmatprep.subr.bf16.mxu0 0
  %2062 = vmatpush1.bf16.msra.mxu0 %v1957
  %2063 = vmatprep.subr.bf16.mxu0 0
  %2064 = vmatpush1.bf16.msra.mxu0 %v1958
  %2065 = vmatprep.subr.bf16.mxu0 0
  %2066 = vmatpush1.bf16.msra.mxu0 %v2055
  %2067 = vmatprep.subr.bf16.mxu0 0
  %2068 = vmatpush1.bf16.msra.mxu0 0
  %2069 = vmatprep.subr.bf16.mxu0 0
  %2070 = vmatpush1.bf16.msra.mxu0 0
  %2071 = vmatprep.subr.bf16.mxu0 0
  %2072 = vmatpush1.bf16.msra.mxu0 0
  %2073 = vmatprep.subr.bf16.mxu0 0
  %2074 = vmatpush1.bf16.msra.mxu0 0
  %2075 = vmatprep.subr.bf16.mxu0 0
  %2076 = vmatpush1.bf16.msra.mxu0 0
  %2077 = vmatprep.subr.bf16.mxu0 0
  %2078 = vmatpush1.bf16.msra.mxu0 0
  %2079 = vmatprep.subr.bf16.mxu0 0
  %2080 = vmatpush1.bf16.msra.mxu0 0
  %2081 = vmatprep.subr.bf16.mxu0 0
  %2082 = vmatpush1.bf16.msra.mxu0 0
  %2083 = vmatprep.subr.bf16.mxu0 0
  %2084 = vmatpush1.bf16.msra.mxu0 0
  %2085 = vmatprep.subr.bf16.mxu0 0
  %2086 = vmatpush1.bf16.msra.mxu0 0
  %2087 = vmatprep.subr.bf16.mxu0 0
  %2088 = vmatpush1.bf16.msra.mxu0 0
  %2089 = vmatprep.mubr.bf16.mxu0 0
  %2090 = vmatmul.mubr.bf16.gmra.mrb[0].mxu0 %v2030
  %v2091 = vpop.f32.mrb[0].mxu0
  %v2092 = vadd.f32 %v1981, %v2091
  %v2093 = vpop.f32.mrb[0].mxu0
  %v2094 = vpop.f32.mrb[0].mxu0
  %v2095 = vadd.f32 %v1983, %v2094
  %v2096 = vpop.f32.mrb[0].mxu0
  %2097 = vmatprep.mubr.bf16.mxu0 0
  %2098 = vmatmul.mubr.bf16.gmra.mrb[0].mxu0 %v2033
  %v2099 = vpop.f32.mrb[0].mxu0
  %v2100 = vadd.f32 %v1985, %v2099
  %v2101 = vpop.f32.mrb[0].mxu0
  %v2102 = vpop.f32.mrb[0].mxu0
  %v2103 = vadd.f32 %v1987, %v2102
  %v2104 = vpop.f32.mrb[0].mxu0
  %2105 = vmatprep.mubr.bf16.mxu0 0
  %2106 = vmatmul.mubr.bf16.gmra.mrb[0].mxu0 %v2036
  %v2107 = vpop.f32.mrb[0].mxu0
  %v2108 = vadd.f32 %v1989, %v2107
  %v2109 = vpop.f32.mrb[0].mxu0
  %v2110 = vpop.f32.mrb[0].mxu0
  %v2111 = vadd.f32 %v1991, %v2110
  %v2112 = vpop.f32.mrb[0].mxu0
  %2113 = vmatprep.mubr.bf16.mxu0 0
  %2114 = vmatmul.mubr.bf16.gmra.mrb[0].mxu0 %v2039
  %v2115 = vpop.f32.mrb[0].mxu0
  %v2116 = vadd.f32 %v1993, %v2115
  %v2117 = vpop.f32.mrb[0].mxu0
  %v2118 = vpop.f32.mrb[0].mxu0
  %v2119 = vadd.f32 %v1995, %v2118
  %v2120 = vpop.f32.mrb[0].mxu0
  %2121 = vmatprep.mubr.bf16.mxu0 0
  %2122 = vmatmul.mubr.bf16.gmra.mrb[0].mxu0 %v2042
  %v2123 = vpop.f32.mrb[0].mxu0
  %v2124 = vadd.f32 %v1997, %v2123
  %v2125 = vpop.f32.mrb[0].mxu0
  %v2126 = vpop.f32.mrb[0].mxu0
  %v2127 = vadd.f32 %v1999, %v2126
  %v2128 = vpop.f32.mrb[0].mxu0
  %2129 = vmatprep.mubr.bf16.mxu0 0
  %2130 = vmatmul.mubr.bf16.gmra.mrb[0].mxu0 %v2045
  %v2131 = vpop.f32.mrb[0].mxu0
  %v2132 = vadd.f32 %v2001, %v2131
  %v2133 = vpop.f32.mrb[0].mxu0
  %v2134 = vpop.f32.mrb[0].mxu0
  %v2135 = vadd.f32 %v2003, %v2134
  %v2136 = vpop.f32.mrb[0].mxu0
  %2137 = vmatprep.mubr.bf16.mxu0 0
  %2138 = vmatmul.mubr.bf16.gmra.mrb[0].mxu0 %v2048
  %v2139 = vpop.f32.mrb[0].mxu0
  %v2140 = vadd.f32 %v2005, %v2139
  %v2141 = vpop.f32.mrb[0].mxu0
  %v2142 = vpop.f32.mrb[0].mxu0
  %v2143 = vadd.f32 %v2007, %v2142
  %v2144 = vpop.f32.mrb[0].mxu0
  %2145 = vmatprep.mubr.bf16.mxu0 0
  %2146 = vmatmul.mubr.bf16.gmra.mrb[0].mxu0 %v2051
  %v2147 = vpop.f32.mrb[0].mxu0
  %v2148 = vadd.f32 %v2009, %v2147
  %v2149 = vpop.f32.mrb[0].mxu0
  %v2150 = vpop.f32.mrb[0].mxu0
  %v2151 = vadd.f32 %v2011, %v2150
  %v2152 = vpop.f32.mrb[0].mxu0
  %2153 = vdwg.mxu0
  %v2154 = vld [vmem:[%s3 + $0x1] sm:$0x1]
  %v2155 = vlaneseq
  %v2156 = vshrl.u32 %v2155, 7
  %v2157 = vsub.s32 0, %v2156
  %v2158 = vrot.slane %v2154, %v2157
  %v2159 = vadd.f32 %v2092, %v2158
  %v2160 = vadd.f32 %v2095, %v2158
  %v2161 = vadd.f32 %v2100, %v2158
  %v2162 = vadd.f32 %v2103, %v2158
  %v2163 = vadd.f32 %v2108, %v2158
  %v2164 = vadd.f32 %v2111, %v2158
  %v2165 = vadd.f32 %v2116, %v2158
  %v2166 = vadd.f32 %v2119, %v2158
  %v2167 = vadd.f32 %v2124, %v2158
  %v2168 = vadd.f32 %v2127, %v2158
  %v2169 = vadd.f32 %v2132, %v2158
  %v2170 = vadd.f32 %v2135, %v2158
  %v2171 = vadd.f32 %v2140, %v2158
  %v2172 = vadd.f32 %v2143, %v2158
  %v2173 = vadd.f32 %v2148, %v2158
  %v2174 = vadd.f32 %v2151, %v2158
  %v2175 = vmax.f32 %v2159, 0.0
  %v2176 = vmax.f32 %v2160, 0.0
  %v2177 = vmax.f32 %v2161, 0.0
  %v2178 = vmax.f32 %v2162, 0.0
  %v2179 = vmax.f32 %v2163, 0.0
  %v2180 = vmax.f32 %v2164, 0.0
  %v2181 = vmax.f32 %v2165, 0.0
  %v2182 = vmax.f32 %v2166, 0.0
  %v2183 = vmax.f32 %v2167, 0.0
  %v2184 = vmax.f32 %v2168, 0.0
  %v2185 = vmax.f32 %v2169, 0.0
  %v2186 = vmax.f32 %v2170, 0.0
  %v2187 = vmax.f32 %v2171, 0.0
  %v2188 = vmax.f32 %v2172, 0.0
  %v2189 = vmax.f32 %v2173, 0.0
  %v2190 = vmax.f32 %v2174, 0.0
  %2191 = vxpose.xlu0.b32.start [1/16] %v2175, 128
  %2192 = vxpose.xlu0.b32.cont [2/16] %v2176, 128
  %2193 = vxpose.xlu0.b32.cont [3/16] %v2177, 128
  %2194 = vxpose.xlu0.b32.cont [4/16] %v2178, 128
  %2195 = vxpose.xlu0.b32.cont [5/16] %v2179, 128
  %2196 = vxpose.xlu0.b32.cont [6/16] %v2180, 128
  %2197 = vxpose.xlu0.b32.cont [7/16] %v2181, 128
  %2198 = vxpose.xlu0.b32.cont [8/16] %v2182, 128
  %2199 = vxpose.xlu0.b32.cont [9/16] %v2183, 128
  %2200 = vxpose.xlu0.b32.cont [10/16] %v2184, 128
  %2201 = vxpose.xlu0.b32.cont [11/16] %v2185, 128
  %2202 = vxpose.xlu0.b32.cont [12/16] %v2186, 128
  %2203 = vxpose.xlu0.b32.cont [13/16] %v2187, 128
  %2204 = vxpose.xlu0.b32.cont [14/16] %v2188, 128
  %2205 = vxpose.xlu0.b32.cont [15/16] %v2189, 128
  %2206 = vxpose.xlu0.b32.end [16/16] %v2190, 128
  %v2207 = vpop.trf.xlu0
  %v2208 = vpop.trf.xlu0
  %v2209 = vpop.trf.xlu0
  %v2210 = vpop.trf.xlu0
  %v2211 = vpop.trf.xlu0
  %v2212 = vpop.trf.xlu0
  %v2213 = vpop.trf.xlu0
  %v2214 = vpop.trf.xlu0
  %v2215 = vpop.trf.xlu0
  %v2216 = vpop.trf.xlu0
  %v2217 = vpop.trf.xlu0
  %v2218 = vpop.trf.xlu0
  %v2219 = vpop.trf.xlu0
  %v2220 = vpop.trf.xlu0
  %v2221 = vpop.trf.xlu0
  %v2222 = vpop.trf.xlu0
  %2223 = vst [vmem:[%s4] sm:$0xff] %v2207
  // Predicated region
  $region18: #{resblockdown_forward.1} parent=0 // pred_check
    _
  $region19: #{resblockdown_forward.1} parent=0 // pred_check_branch
    %2225 = sbr.rel (0) target = $region21
  $region20: #{resblockdown_forward.1} parent=0 // pred_region
    _
  $region21: #{resblockdown_forward.1} parent=0 // pred_fallthru
    _
  // Predicated region
  $region22: #{resblockdown_forward.1} parent=0 // pred_check
    _
  $region23: #{resblockdown_forward.1} parent=0 // pred_check_branch
    %2227 = sbr.rel (0) target = $region25
  $region24: #{resblockdown_forward.1} parent=0 // pred_region
    _
  $region25: #{resblockdown_forward.1} parent=0 // pred_fallthru
    _

</llo_original>
